<compile_context>
chip_gen: v6e
topology: v6e:2x2x1
jax: 0.10.0
libtpu: 0.0.40
codegen_flags: <defaults>
</compile_context>

<pallas_src>
import functools

import jax
import jax.numpy as jnp
from jax.experimental import pallas as pl
from jax.experimental.pallas import tpu as pltpu

GROUPS = 32
EPS = 1e-5
_PAD = 8  # sublane padding for the conv2 tap stack (keeps row slices aligned)


def _loc_head_kernel(x_ref, w1s_ref, cvec_ref, gmask_gc_ref, gmask_cg_ref,
                     seg_tn_ref, seg_nt_ref, w2s_ref, b2_ref, o_ref, *, t_len):
    """One grid step: B samples folded along the lane axis.

    x_ref:        (C, B*T)    compute dtype (f32 or bf16)
    w1s_ref:      (3C, C)     conv1 taps stacked along rows [tap0|tap1|tap2]
    cvec_ref:     (C, 3)      columns [b1, gamma, beta], f32
    gmask_gc_ref: (G, C)      one-hot channel->group reduction, f32
    gmask_cg_ref: (C, G)      one-hot group->channel expansion, f32
    seg_tn_ref:   (B*T, B)    one-hot column->sample reduction, f32
    seg_nt_ref:   (B, B*T)    one-hot sample->column expansion, f32
    w2s_ref:      (3*_PAD, C) conv2 taps (each padded to 8 rows)
    b2_ref:       (Cout, 1)   o_ref: (Cout, B*T)
    """
    f32 = jnp.float32
    x = x_ref[...]                                   # (C, B*T)
    C = gmask_cg_ref.shape[0]
    G = gmask_gc_ref.shape[0]
    BT = x.shape[1]
    Cout = o_ref.shape[0]
    inv_cnt = 1.0 / float(t_len * (C // G))

    b1 = cvec_ref[:, 0:1]                            # (C, 1) f32
    gamma = cvec_ref[:, 1:2]
    beta = cvec_ref[:, 2:3]

    # (1, B*T) edge masks: zero at the first / last column of each sample.
    col = jax.lax.broadcasted_iota(jnp.int32, (1, BT), 1) % t_len
    mask_l = (col != 0).astype(f32)                  # kills wrap from t-1
    mask_r = (col != t_len - 1).astype(f32)          # kills wrap from t+1

    # ---- conv1 (C->C, k=3, 'same'): one stacked matmul, rolls + edge masks --
    y_all = jnp.dot(w1s_ref[...], x, preferred_element_type=f32)     # (3C, BT)
    y = (y_all[C:2 * C]
         + mask_l * pltpu.roll(y_all[0:C], shift=1, axis=1)
         + mask_r * pltpu.roll(y_all[2 * C:3 * C], shift=BT - 1, axis=1))
    # conv1 bias is folded into the GroupNorm shift below.

    # ---- GroupNorm(G, C): per-(sample, group) stats, two-pass variance -----
    s_cn = jnp.dot(y, seg_tn_ref[...], preferred_element_type=f32)   # (C, B)
    s_cn = s_cn + float(t_len) * b1                                  # + bias sum
    mean_gn = jnp.dot(gmask_gc_ref[...], s_cn,
                      preferred_element_type=f32) * inv_cnt          # (G, B)
    mean_cn = jnp.dot(gmask_cg_ref[...], mean_gn,
                      preferred_element_type=f32)                    # (C, B)
    shift_cn = mean_cn - b1                                          # so y - shift == (y+b1) - mean
    shift = jnp.dot(shift_cn, seg_nt_ref[...],
                    preferred_element_type=f32)                      # (C, BT)
    yc = y - shift                                                   # centered (incl. bias)
    ss_cn = jnp.dot(yc * yc, seg_tn_ref[...],
                    preferred_element_type=f32)                      # (C, B)
    var_gn = jnp.dot(gmask_gc_ref[...], ss_cn,
                     preferred_element_type=f32) * inv_cnt           # (G, B)
    inv_gn = jax.lax.rsqrt(var_gn + EPS)
    inv_cn = jnp.dot(gmask_cg_ref[...], inv_gn,
                     preferred_element_type=f32)                     # (C, B)
    scale_cn = inv_cn * gamma
    scale = jnp.dot(scale_cn, seg_nt_ref[...],
                    preferred_element_type=f32)                      # (C, BT)

    yr = jnp.maximum(yc * scale + beta, 0.0)                         # (C, BT)

    # ---- conv2 (C->2, k=3, 'same'): one stacked (padded) matmul ------------
    yrc = yr.astype(w2s_ref.dtype)
    z_all = jnp.dot(w2s_ref[...], yrc, preferred_element_type=f32)   # (24, BT)
    z = (z_all[_PAD:2 * _PAD]
         + mask_l * pltpu.roll(z_all[0:_PAD], shift=1, axis=1)
         + mask_r * pltpu.roll(z_all[2 * _PAD:3 * _PAD], shift=BT - 1, axis=1))
    o_ref[...] = (z[0:Cout] + b2_ref[...]).astype(o_ref.dtype)       # (Cout, BT)


def _samples_per_step(n, c, t, itemsize):
    """Pick B = samples folded into the lane axis per grid step."""
    if t % 128 != 0:
        return n  # lane dim of the block must then equal the full folded dim
    budget = 24 * 2**20                      # per-step working-set budget (v7x-safe)
    per_sample = (9 * 4 + 3 * itemsize) * c * t
    divisors = [b for b in range(1, n + 1)
                if n % b == 0 and b * per_sample <= budget]
    if not divisors:
        return 1
    good = [b for b in divisors if b * t >= 1024]   # >=1024 lanes of work / step
    return min(good) if good else divisors[-1]


def loc_head_forward(x, w1_oik, b1, gamma, beta, w2_oik, b2, *,
                     compute_dtype=jnp.bfloat16, samples_per_step=None):
    """x: (N, C, T) f32; conv weights in PyTorch layout (Cout, Cin, 3).

    Returns (N, 2, T) f32.  compute_dtype=bfloat16 (default) uses MXU-native
    matmul operands with f32 accumulation and f32 GroupNorm math;
    compute_dtype=float32 matches the PyTorch f32 numerics tightly.
    """
    N, C, T = x.shape
    assert C % GROUPS == 0, "GroupNorm(32, C) requires C % 32 == 0"
    Cout = w2_oik.shape[0]
    itemsize = jnp.dtype(compute_dtype).itemsize

    B = samples_per_step or _samples_per_step(N, C, T, itemsize)
    assert N % B == 0, "samples_per_step must divide the batch"
    assert B == N or T % 128 == 0, "partial-batch blocks need T % 128 == 0"
    BT = B * T

    # ---- wrapper-side layout plumbing / weight packing ----------------------
    x_f = jnp.transpose(x, (1, 0, 2)).reshape(C, N * T).astype(compute_dtype)
    w1s = jnp.transpose(w1_oik, (2, 0, 1)).reshape(3 * C, C).astype(compute_dtype)
    w2_taps = jnp.transpose(w2_oik, (2, 0, 1))                       # (3, Cout, C)
    w2s = jnp.zeros((3, _PAD, C), jnp.float32).at[:, :Cout, :].set(
        w2_taps.astype(jnp.float32)).reshape(3 * _PAD, C).astype(compute_dtype)
    cvec = jnp.stack([b1, gamma, beta], axis=1).astype(jnp.float32)  # (C, 3)
    b2_r = b2.reshape(Cout, 1).astype(jnp.float32)

    # One-hot group masks (contiguous channel groups, PyTorch ordering).
    grp = jnp.arange(C) // (C // GROUPS)
    gmask_cg = (grp[:, None] == jnp.arange(GROUPS)[None, :]).astype(jnp.float32)
    gmask_gc = gmask_cg.T                                            # (G, C)
    # One-hot column->sample segment matrices for the folded lane axis.
    seg = jnp.arange(BT) // T
    seg_tn = (seg[:, None] == jnp.arange(B)[None, :]).astype(jnp.float32)
    seg_nt = seg_tn.T                                                # (B, BT)

    # Scoped-VMEM request: working set + headroom, clamped for v7x (64 MiB).
    est = (9 * 4 + 3 * itemsize) * C * BT            # f32 slabs + compute-dtype copies
    est += 2 * (3 * C + 3 * _PAD) * C * itemsize     # double-buffered stacked weights
    est += 2 * BT * (B + 128) * 4                    # segment matrices (lane padded)
    est += 4 << 20                                   # Mosaic internal scratch slack
    vmem_limit = int(min(46 << 20, max(32 << 20, est)))

    out = pl.pallas_call(
        functools.partial(_loc_head_kernel, t_len=T),
        out_shape=jax.ShapeDtypeStruct((Cout, N * T), jnp.float32),
        grid_spec=pltpu.PrefetchScalarGridSpec(
            num_scalar_prefetch=0,
            grid=(N // B,),
            in_specs=[
                pl.BlockSpec((C, BT), lambda i: (0, i)),          # x (folded)
                pl.BlockSpec((3 * C, C), lambda i: (0, 0)),       # w1 stacked
                pl.BlockSpec((C, 3), lambda i: (0, 0)),           # [b1|gamma|beta]
                pl.BlockSpec((GROUPS, C), lambda i: (0, 0)),      # gmask_gc
                pl.BlockSpec((C, GROUPS), lambda i: (0, 0)),      # gmask_cg
                pl.BlockSpec((BT, B), lambda i: (0, 0)),          # seg_tn
                pl.BlockSpec((B, BT), lambda i: (0, 0)),          # seg_nt
                pl.BlockSpec((3 * _PAD, C), lambda i: (0, 0)),    # w2 stacked
                pl.BlockSpec((Cout, 1), lambda i: (0, 0)),        # b2
            ],
            out_specs=pl.BlockSpec((Cout, BT), lambda i: (0, i)),
        ),
        compiler_params=pltpu.CompilerParams(
            dimension_semantics=("parallel",),
            vmem_limit_bytes=vmem_limit),
    )(x_f, w1s, cvec, gmask_gc, gmask_cg, seg_tn, seg_nt, w2s, b2_r)

    return jnp.transpose(out.reshape(Cout, N, T), (1, 0, 2))        # (N, Cout, T)


# ---------------- pure-JAX reference (independent of the kernel) -------------
def _conv1d_same_ref(x, w_oik, b):
    xp = jnp.pad(x, ((0, 0), (0, 0), (1, 1)))
    out = jax.lax.conv_general_dilated(
        xp, w_oik, window_strides=(1,), padding='VALID',
        dimension_numbers=('NCH', 'OIH', 'NCH'),
        precision=jax.lax.Precision.HIGHEST)
    return out + b[None, :, None]


def loc_head_ref(x, w1_oik, b1, gamma, beta, w2_oik, b2):
    y = _conv1d_same_ref(x, w1_oik, b1)
    N, C, T = y.shape
    yg = y.reshape(N, GROUPS, C // GROUPS, T)
    mean = yg.mean(axis=(2, 3), keepdims=True)
    var = yg.var(axis=(2, 3), keepdims=True)
    yn = (yg - mean) / jnp.sqrt(var + EPS)
    yn = yn.reshape(N, C, T) * gamma[None, :, None] + beta[None, :, None]
    yr = jnp.maximum(yn, 0.0)
    return _conv1d_same_ref(yr, w2_oik, b2)


if __name__ == "__main__":
    # Small shapes consistent with the module: C % 32 == 0 (GroupNorm(32, C)),
    # T a multiple of 128 keeps the folded lane axis dense.
    N, C, T = 2, 64, 128

    key = jax.random.PRNGKey(0)
    kx, k1, kb1, kg, kb, k2, kb2 = jax.random.split(key, 7)
    x = jax.random.normal(kx, (N, C, T), jnp.float32)
    w1_oik = jax.random.normal(k1, (C, C, 3), jnp.float32) * 0.05
    b1 = jax.random.normal(kb1, (C,), jnp.float32) * 0.1
    gamma = 1.0 + 0.1 * jax.random.normal(kg, (C,), jnp.float32)
    beta = 0.1 * jax.random.normal(kb, (C,), jnp.float32)
    w2_oik = jax.random.normal(k2, (2, C, 3), jnp.float32) * 0.05
    b2 = jax.random.normal(kb2, (2,), jnp.float32) * 0.1

    ref = loc_head_ref(x, w1_oik, b1, gamma, beta, w2_oik, b2)

    # f32 path (matches the PyTorch numerics; tolerance leaves room for the
    # MXU's f32 matmul mode).
    out = jax.block_until_ready(loc_head_forward(
        x, w1_oik, b1, gamma, beta, w2_oik, b2, compute_dtype=jnp.float32))
    assert out.shape == (N, 2, T), out.shape
    err = float(jnp.max(jnp.abs(out - ref)))
    assert jnp.allclose(out, ref, atol=5e-3, rtol=5e-3), err

    # Multi-step grid path (explicit samples_per_step < N), still f32.
    N2 = 8
    x2 = jax.random.normal(jax.random.PRNGKey(1), (N2, C, T), jnp.float32)
    ref2 = loc_head_ref(x2, w1_oik, b1, gamma, beta, w2_oik, b2)
    out2 = jax.block_until_ready(loc_head_forward(
        x2, w1_oik, b1, gamma, beta, w2_oik, b2,
        compute_dtype=jnp.float32, samples_per_step=2))
    err2 = float(jnp.max(jnp.abs(out2 - ref2)))
    assert jnp.allclose(out2, ref2, atol=5e-3, rtol=5e-3), err2

    # bf16 fast path (default): MXU-native operands, f32 accumulation.
    out_bf = jax.block_until_ready(loc_head_forward(
        x, w1_oik, b1, gamma, beta, w2_oik, b2))
    assert out_bf.shape == (N, 2, T)
    assert float(jnp.max(jnp.abs(out_bf - ref))) < 0.2

    print("KERNEL_OK")
</pallas_src>

<mosaic_0001>
module attributes {stable_mosaic.version = 11 : i64} {
  func.func @_loc_head_kernel(%arg0: i32, %arg1: memref<64x256xf32, #tpu.memory_space<vmem>>, %arg2: memref<192x64xf32, #tpu.memory_space<vmem>>, %arg3: memref<64x3xf32, #tpu.memory_space<vmem>>, %arg4: memref<32x64xf32, #tpu.memory_space<vmem>>, %arg5: memref<64x32xf32, #tpu.memory_space<vmem>>, %arg6: memref<256x2xf32, #tpu.memory_space<vmem>>, %arg7: memref<2x256xf32, #tpu.memory_space<vmem>>, %arg8: memref<24x64xf32, #tpu.memory_space<vmem>>, %arg9: memref<2x1xf32, #tpu.memory_space<vmem>>, %arg10: memref<2x256xf32, #tpu.memory_space<vmem>>) attributes {dimension_semantics = [#tpu.dimension_semantics<parallel>], iteration_bounds = array<i64: 1>, scalar_prefetch = 0 : i64, scratch_operands = 0 : i64, tpu.core_type = #tpu.core_type<tc>, window_params = [{transform_indices = @transform_0, window_bounds = array<i64: 64, 256>}, {pipeline_mode = #tpu.pipeline_mode<synchronous>, transform_indices = @transform_1, window_bounds = array<i64: 192, 64>}, {pipeline_mode = #tpu.pipeline_mode<synchronous>, transform_indices = @transform_2, window_bounds = array<i64: 64, 3>}, {pipeline_mode = #tpu.pipeline_mode<synchronous>, transform_indices = @transform_3, window_bounds = array<i64: 32, 64>}, {pipeline_mode = #tpu.pipeline_mode<synchronous>, transform_indices = @transform_4, window_bounds = array<i64: 64, 32>}, {pipeline_mode = #tpu.pipeline_mode<synchronous>, transform_indices = @transform_5, window_bounds = array<i64: 256, 2>}, {pipeline_mode = #tpu.pipeline_mode<synchronous>, transform_indices = @transform_6, window_bounds = array<i64: 2, 256>}, {pipeline_mode = #tpu.pipeline_mode<synchronous>, transform_indices = @transform_7, window_bounds = array<i64: 24, 64>}, {pipeline_mode = #tpu.pipeline_mode<synchronous>, transform_indices = @transform_8, window_bounds = array<i64: 2, 1>}, {transform_indices = @transform_9, window_bounds = array<i64: 2, 256>}]} {
    %c0 = arith.constant 0 : index
    %c0_0 = arith.constant 0 : index
    %0 = vector.load %arg1[%c0, %c0_0] : memref<64x256xf32, #tpu.memory_space<vmem>>, vector<64x256xf32>
    %c0_1 = arith.constant 0 : index
    %c0_2 = arith.constant 0 : index
    %1 = vector.load %arg3[%c0_1, %c0_2] : memref<64x3xf32, #tpu.memory_space<vmem>>, vector<64x1xf32>
    %c0_3 = arith.constant 0 : index
    %c1 = arith.constant 1 : index
    %2 = vector.load %arg3[%c0_3, %c1] : memref<64x3xf32, #tpu.memory_space<vmem>>, vector<64x1xf32>
    %c0_4 = arith.constant 0 : index
    %c2 = arith.constant 2 : index
    %3 = vector.load %arg3[%c0_4, %c2] : memref<64x3xf32, #tpu.memory_space<vmem>>, vector<64x1xf32>
    %4 = tpu.iota {dimensions = array<i32: 1>} : vector<1x256xi32>
    %c128_i32 = arith.constant 128 : i32
    %c0_i32 = arith.constant 0 : i32
    %5 = arith.cmpi eq, %c128_i32, %c0_i32 : i32
    %c1_i32 = arith.constant 1 : i32
    %6 = arith.select %5, %c1_i32, %c128_i32 : i32
    %7 = vector.broadcast %6 : i32 to vector<1x256xi32>
    %8 = arith.remsi %4, %7 : vector<1x256xi32>
    %c0_i32_5 = arith.constant 0 : i32
    %9 = vector.broadcast %c0_i32_5 : i32 to vector<1x256xi32>
    %10 = arith.cmpi ne, %8, %9 : vector<1x256xi32>
    %c0_i32_6 = arith.constant 0 : i32
    %11 = vector.broadcast %c0_i32_6 : i32 to vector<1x256xi32>
    %12 = arith.cmpi slt, %8, %11 : vector<1x256xi32>
    %c0_i32_7 = arith.constant 0 : i32
    %13 = arith.cmpi slt, %6, %c0_i32_7 : i32
    %14 = vector.broadcast %13 : i1 to vector<1x256xi1>
    %15 = vector.broadcast %14 : vector<1x256xi1> to vector<1x256xi1>
    %16 = arith.xori %12, %15 : vector<1x256xi1>
    %17 = arith.andi %16, %10 : vector<1x256xi1>
    %18 = vector.broadcast %6 : i32 to vector<1x256xi32>
    %19 = arith.addi %8, %18 : vector<1x256xi32>
    %20 = arith.select %17, %19, %8 : vector<1x256xi1>, vector<1x256xi32>
    %c0_i32_8 = arith.constant 0 : i32
    %21 = vector.broadcast %c0_i32_8 : i32 to vector<1x256xi32>
    %22 = arith.cmpi ne, %20, %21 : vector<1x256xi32>
    %23 = arith.extui %22 : vector<1x256xi1> to vector<1x256xi32>
    %24 = arith.sitofp %23 : vector<1x256xi32> to vector<1x256xf32>
    %c127_i32 = arith.constant 127 : i32
    %25 = vector.broadcast %c127_i32 : i32 to vector<1x256xi32>
    %26 = arith.cmpi ne, %20, %25 : vector<1x256xi32>
    %27 = arith.extui %26 : vector<1x256xi1> to vector<1x256xi32>
    %28 = arith.sitofp %27 : vector<1x256xi32> to vector<1x256xf32>
    %c0_9 = arith.constant 0 : index
    %c0_10 = arith.constant 0 : index
    %29 = vector.load %arg2[%c0_9, %c0_10] : memref<192x64xf32, #tpu.memory_space<vmem>>, vector<192x64xf32>
    %cst = arith.constant dense<0.000000e+00> : vector<192x256xf32>
    %30 = tpu.matmul %29, %0, %cst {dimension_numbers = #tpu.dot_dimension_numbers<[1], [0], [0], [1], [0, 0, 1, 1], [], []>} : vector<192x64xf32>, vector<64x256xf32>, vector<192x256xf32> -> vector<192x256xf32>
    %31 = vector.extract_strided_slice %30 {offsets = [64, 0], sizes = [64, 256], strides = [1, 1]} : vector<192x256xf32> to vector<64x256xf32>
    %32 = vector.extract_strided_slice %30 {offsets = [0, 0], sizes = [64, 256], strides = [1, 1]} : vector<192x256xf32> to vector<64x256xf32>
    %c1_i32_11 = arith.constant 1 : i32
    %33 = tpu.dynamic_rotate %32 by %c1_i32_11 dim 1 : vector<64x256xf32>, i32 -> vector<64x256xf32>
    %34 = vector.broadcast %24 : vector<1x256xf32> to vector<64x256xf32>
    %35 = arith.mulf %34, %33 : vector<64x256xf32>
    %36 = arith.addf %31, %35 : vector<64x256xf32>
    %37 = vector.extract_strided_slice %30 {offsets = [128, 0], sizes = [64, 256], strides = [1, 1]} : vector<192x256xf32> to vector<64x256xf32>
    %c255_i32 = arith.constant 255 : i32
    %38 = tpu.dynamic_rotate %37 by %c255_i32 dim 1 : vector<64x256xf32>, i32 -> vector<64x256xf32>
    %39 = vector.broadcast %28 : vector<1x256xf32> to vector<64x256xf32>
    %40 = arith.mulf %39, %38 : vector<64x256xf32>
    %41 = arith.addf %36, %40 : vector<64x256xf32>
    %c0_12 = arith.constant 0 : index
    %c0_13 = arith.constant 0 : index
    %42 = vector.load %arg6[%c0_12, %c0_13] : memref<256x2xf32, #tpu.memory_space<vmem>>, vector<256x2xf32>
    %cst_14 = arith.constant dense<0.000000e+00> : vector<64x2xf32>
    %43 = tpu.matmul %41, %42, %cst_14 {dimension_numbers = #tpu.dot_dimension_numbers<[1], [0], [0], [1], [0, 0, 1, 1], [], []>} : vector<64x256xf32>, vector<256x2xf32>, vector<64x2xf32> -> vector<64x2xf32>
    %cst_15 = arith.constant 1.280000e+02 : f32
    %44 = vector.broadcast %cst_15 : f32 to vector<64x1xf32>
    %45 = arith.mulf %44, %1 : vector<64x1xf32>
    %46 = vector.broadcast %45 : vector<64x1xf32> to vector<64x2xf32>
    %47 = arith.addf %43, %46 : vector<64x2xf32>
    %c0_16 = arith.constant 0 : index
    %c0_17 = arith.constant 0 : index
    %48 = vector.load %arg4[%c0_16, %c0_17] : memref<32x64xf32, #tpu.memory_space<vmem>>, vector<32x64xf32>
    %cst_18 = arith.constant dense<0.000000e+00> : vector<32x2xf32>
    %49 = tpu.matmul %48, %47, %cst_18 {dimension_numbers = #tpu.dot_dimension_numbers<[1], [0], [0], [1], [0, 0, 1, 1], [], []>} : vector<32x64xf32>, vector<64x2xf32>, vector<32x2xf32> -> vector<32x2xf32>
    %cst_19 = arith.constant 3.906250e-03 : f32
    %50 = vector.broadcast %cst_19 : f32 to vector<32x2xf32>
    %51 = arith.mulf %49, %50 : vector<32x2xf32>
    %c0_20 = arith.constant 0 : index
    %c0_21 = arith.constant 0 : index
    %52 = vector.load %arg5[%c0_20, %c0_21] : memref<64x32xf32, #tpu.memory_space<vmem>>, vector<64x32xf32>
    %cst_22 = arith.constant dense<0.000000e+00> : vector<64x2xf32>
    %53 = tpu.matmul %52, %51, %cst_22 {dimension_numbers = #tpu.dot_dimension_numbers<[1], [0], [0], [1], [0, 0, 1, 1], [], []>} : vector<64x32xf32>, vector<32x2xf32>, vector<64x2xf32> -> vector<64x2xf32>
    %54 = vector.broadcast %1 : vector<64x1xf32> to vector<64x2xf32>
    %55 = arith.subf %53, %54 : vector<64x2xf32>
    %c0_23 = arith.constant 0 : index
    %c0_24 = arith.constant 0 : index
    %56 = vector.load %arg7[%c0_23, %c0_24] : memref<2x256xf32, #tpu.memory_space<vmem>>, vector<2x256xf32>
    %cst_25 = arith.constant dense<0.000000e+00> : vector<64x256xf32>
    %57 = tpu.matmul %55, %56, %cst_25 {dimension_numbers = #tpu.dot_dimension_numbers<[1], [0], [0], [1], [0, 0, 1, 1], [], []>} : vector<64x2xf32>, vector<2x256xf32>, vector<64x256xf32> -> vector<64x256xf32>
    %58 = arith.subf %41, %57 : vector<64x256xf32>
    %59 = arith.mulf %58, %58 : vector<64x256xf32>
    %c0_26 = arith.constant 0 : index
    %c0_27 = arith.constant 0 : index
    %60 = vector.load %arg6[%c0_26, %c0_27] : memref<256x2xf32, #tpu.memory_space<vmem>>, vector<256x2xf32>
    %cst_28 = arith.constant dense<0.000000e+00> : vector<64x2xf32>
    %61 = tpu.matmul %59, %60, %cst_28 {dimension_numbers = #tpu.dot_dimension_numbers<[1], [0], [0], [1], [0, 0, 1, 1], [], []>} : vector<64x256xf32>, vector<256x2xf32>, vector<64x2xf32> -> vector<64x2xf32>
    %c0_29 = arith.constant 0 : index
    %c0_30 = arith.constant 0 : index
    %62 = vector.load %arg4[%c0_29, %c0_30] : memref<32x64xf32, #tpu.memory_space<vmem>>, vector<32x64xf32>
    %cst_31 = arith.constant dense<0.000000e+00> : vector<32x2xf32>
    %63 = tpu.matmul %62, %61, %cst_31 {dimension_numbers = #tpu.dot_dimension_numbers<[1], [0], [0], [1], [0, 0, 1, 1], [], []>} : vector<32x64xf32>, vector<64x2xf32>, vector<32x2xf32> -> vector<32x2xf32>
    %cst_32 = arith.constant 3.906250e-03 : f32
    %64 = vector.broadcast %cst_32 : f32 to vector<32x2xf32>
    %65 = arith.mulf %63, %64 : vector<32x2xf32>
    %cst_33 = arith.constant 9.99999974E-6 : f32
    %66 = vector.broadcast %cst_33 : f32 to vector<32x2xf32>
    %67 = arith.addf %65, %66 : vector<32x2xf32>
    %68 = math.rsqrt %67 : vector<32x2xf32>
    %c0_34 = arith.constant 0 : index
    %c0_35 = arith.constant 0 : index
    %69 = vector.load %arg5[%c0_34, %c0_35] : memref<64x32xf32, #tpu.memory_space<vmem>>, vector<64x32xf32>
    %cst_36 = arith.constant dense<0.000000e+00> : vector<64x2xf32>
    %70 = tpu.matmul %69, %68, %cst_36 {dimension_numbers = #tpu.dot_dimension_numbers<[1], [0], [0], [1], [0, 0, 1, 1], [], []>} : vector<64x32xf32>, vector<32x2xf32>, vector<64x2xf32> -> vector<64x2xf32>
    %71 = vector.broadcast %2 : vector<64x1xf32> to vector<64x2xf32>
    %72 = arith.mulf %70, %71 : vector<64x2xf32>
    %c0_37 = arith.constant 0 : index
    %c0_38 = arith.constant 0 : index
    %73 = vector.load %arg7[%c0_37, %c0_38] : memref<2x256xf32, #tpu.memory_space<vmem>>, vector<2x256xf32>
    %cst_39 = arith.constant dense<0.000000e+00> : vector<64x256xf32>
    %74 = tpu.matmul %72, %73, %cst_39 {dimension_numbers = #tpu.dot_dimension_numbers<[1], [0], [0], [1], [0, 0, 1, 1], [], []>} : vector<64x2xf32>, vector<2x256xf32>, vector<64x256xf32> -> vector<64x256xf32>
    %75 = arith.mulf %58, %74 : vector<64x256xf32>
    %76 = vector.broadcast %3 : vector<64x1xf32> to vector<64x256xf32>
    %77 = arith.addf %75, %76 : vector<64x256xf32>
    %cst_40 = arith.constant 0.000000e+00 : f32
    %78 = vector.broadcast %cst_40 : f32 to vector<64x256xf32>
    %79 = arith.maximumf %77, %78 : vector<64x256xf32>
    %c0_41 = arith.constant 0 : index
    %c0_42 = arith.constant 0 : index
    %80 = vector.load %arg8[%c0_41, %c0_42] : memref<24x64xf32, #tpu.memory_space<vmem>>, vector<24x64xf32>
    %cst_43 = arith.constant dense<0.000000e+00> : vector<24x256xf32>
    %81 = tpu.matmul %80, %79, %cst_43 {dimension_numbers = #tpu.dot_dimension_numbers<[1], [0], [0], [1], [0, 0, 1, 1], [], []>} : vector<24x64xf32>, vector<64x256xf32>, vector<24x256xf32> -> vector<24x256xf32>
    %82 = vector.extract_strided_slice %81 {offsets = [8, 0], sizes = [8, 256], strides = [1, 1]} : vector<24x256xf32> to vector<8x256xf32>
    %83 = vector.extract_strided_slice %81 {offsets = [0, 0], sizes = [8, 256], strides = [1, 1]} : vector<24x256xf32> to vector<8x256xf32>
    %c1_i32_44 = arith.constant 1 : i32
    %84 = tpu.dynamic_rotate %83 by %c1_i32_44 dim 1 : vector<8x256xf32>, i32 -> vector<8x256xf32>
    %85 = vector.broadcast %24 : vector<1x256xf32> to vector<8x256xf32>
    %86 = arith.mulf %85, %84 : vector<8x256xf32>
    %87 = arith.addf %82, %86 : vector<8x256xf32>
    %88 = vector.extract_strided_slice %81 {offsets = [16, 0], sizes = [8, 256], strides = [1, 1]} : vector<24x256xf32> to vector<8x256xf32>
    %c255_i32_45 = arith.constant 255 : i32
    %89 = tpu.dynamic_rotate %88 by %c255_i32_45 dim 1 : vector<8x256xf32>, i32 -> vector<8x256xf32>
    %90 = vector.broadcast %28 : vector<1x256xf32> to vector<8x256xf32>
    %91 = arith.mulf %90, %89 : vector<8x256xf32>
    %92 = arith.addf %87, %91 : vector<8x256xf32>
    %93 = vector.extract_strided_slice %92 {offsets = [0, 0], sizes = [2, 256], strides = [1, 1]} : vector<8x256xf32> to vector<2x256xf32>
    %c0_46 = arith.constant 0 : index
    %c0_47 = arith.constant 0 : index
    %94 = vector.load %arg9[%c0_46, %c0_47] : memref<2x1xf32, #tpu.memory_space<vmem>>, vector<2x1xf32>
    %95 = vector.broadcast %94 : vector<2x1xf32> to vector<2x256xf32>
    %96 = arith.addf %93, %95 : vector<2x256xf32>
    %c0_48 = arith.constant 0 : index
    %c0_49 = arith.constant 0 : index
    %97 = vector.load %arg10[%c0_48, %c0_49] : memref<2x256xf32, #tpu.memory_space<vmem>>, vector<2x256xf32>
    tpu.vector_store %arg10[%c0_48, %c0_49], %96 {strides = array<i32>} : memref<2x256xf32, #tpu.memory_space<vmem>>, vector<2x256xf32>,
    return
  }
  func.func @transform_0(%arg0: i32) -> (i32, i32) {
    %c0_i32 = arith.constant 0 : i32
    %c0_i32_0 = arith.constant 0 : i32
    return %c0_i32, %arg0 : i32, i32
  }
  func.func @transform_1(%arg0: i32) -> (i32, i32) {
    %c0_i32 = arith.constant 0 : i32
    %c0_i32_0 = arith.constant 0 : i32
    %c0_i32_1 = arith.constant 0 : i32
    return %c0_i32, %c0_i32_0 : i32, i32
  }
  func.func @transform_2(%arg0: i32) -> (i32, i32) {
    %c0_i32 = arith.constant 0 : i32
    %c0_i32_0 = arith.constant 0 : i32
    %c0_i32_1 = arith.constant 0 : i32
    return %c0_i32, %c0_i32_0 : i32, i32
  }
  func.func @transform_3(%arg0: i32) -> (i32, i32) {
    %c0_i32 = arith.constant 0 : i32
    %c0_i32_0 = arith.constant 0 : i32
    %c0_i32_1 = arith.constant 0 : i32
    return %c0_i32, %c0_i32_0 : i32, i32
  }
  func.func @transform_4(%arg0: i32) -> (i32, i32) {
    %c0_i32 = arith.constant 0 : i32
    %c0_i32_0 = arith.constant 0 : i32
    %c0_i32_1 = arith.constant 0 : i32
    return %c0_i32, %c0_i32_0 : i32, i32
  }
  func.func @transform_5(%arg0: i32) -> (i32, i32) {
    %c0_i32 = arith.constant 0 : i32
    %c0_i32_0 = arith.constant 0 : i32
    %c0_i32_1 = arith.constant 0 : i32
    return %c0_i32, %c0_i32_0 : i32, i32
  }
  func.func @transform_6(%arg0: i32) -> (i32, i32) {
    %c0_i32 = arith.constant 0 : i32
    %c0_i32_0 = arith.constant 0 : i32
    %c0_i32_1 = arith.constant 0 : i32
    return %c0_i32, %c0_i32_0 : i32, i32
  }
  func.func @transform_7(%arg0: i32) -> (i32, i32) {
    %c0_i32 = arith.constant 0 : i32
    %c0_i32_0 = arith.constant 0 : i32
    %c0_i32_1 = arith.constant 0 : i32
    return %c0_i32, %c0_i32_0 : i32, i32
  }
  func.func @transform_8(%arg0: i32) -> (i32, i32) {
    %c0_i32 = arith.constant 0 : i32
    %c0_i32_0 = arith.constant 0 : i32
    %c0_i32_1 = arith.constant 0 : i32
    return %c0_i32, %c0_i32_0 : i32, i32
  }
  func.func @transform_9(%arg0: i32) -> (i32, i32) {
    %c0_i32 = arith.constant 0 : i32
    %c0_i32_0 = arith.constant 0 : i32
    return %c0_i32, %arg0 : i32, i32
  }
}

</mosaic_0001>

<llo_original>
// kernel: tpu_custom_call.1
$region0: #{tpu_custom_call.1}
  #allocation0 [shape = 'u32[]', space=smem, size = 0x4, offset = 0x4, fixed_abs, tag = 'smem constant byte address 0x4 - core index']
  #allocation1 [shape = 'u32[144,128]{1,0:T(1,128)}', space=vmem, size = 0x12000, scoped, tag = 'internal scratch']
  %s0 = inlined_call_operand.vmem [shape: f32[64,256], index: 0, kind: input, shape index: {}]
  %s1 = inlined_call_operand.vmem [shape: f32[192,64], index: 1, kind: input, shape index: {}]
  %s2 = inlined_call_operand.vmem [shape: f32[64,3], index: 2, kind: input, shape index: {}]
  %s3 = inlined_call_operand.vmem [shape: f32[32,64], index: 3, kind: input, shape index: {}]
  %s4 = inlined_call_operand.vmem [shape: f32[64,32], index: 4, kind: input, shape index: {}]
  %s5 = inlined_call_operand.vmem [shape: f32[256,2], index: 5, kind: input, shape index: {}]
  %s6 = inlined_call_operand.vmem [shape: f32[2,256], index: 6, kind: input, shape index: {}]
  %s7 = inlined_call_operand.vmem [shape: f32[24,64], index: 7, kind: input, shape index: {}]
  %s8 = inlined_call_operand.vmem [shape: f32[2,1], index: 8, kind: input, shape index: {}]
  %s9 = inlined_call_operand.hbm [shape: f32[2,256], index: 9, kind: output, shape index: {}]
  %s10 = sld [smem:[#allocation0]]
  $region46: #{tpu_custom_call.1} parent=0
    _
  %s12 = ssub.s32 1, %s10
  %s13 = scalar_select 0, %s12, %s10
  $region1: #{tpu_custom_call.1} parent=0
    #allocation2 [shape = 'u8[2048]{0}', space=vmem, size = 0x800, scoped, tag = 'output window, operand 0, single buffered']
    #allocation3 [shape = 's32[1]{0}', space=sflag, size = 0x4, scoped, tag = 'scoped memory for tpu_custom_call.1']
    %14 = vsyncpa [#allocation3], 0
    // Predicated region
    $region2: #{tpu_custom_call.1} parent=1 // pred_check
      _
    $region3: #{tpu_custom_call.1} parent=1 // pred_check_branch
      %16 = sbr.rel (0) target = $region5
    $region4: #{tpu_custom_call.1} parent=1 // pred_region
      _
    $region5: #{tpu_custom_call.1} parent=1 // pred_fallthru
      _
    // Predicated region
    $region6: #{tpu_custom_call.1} parent=1 // pred_check
      _
    $region7: #{tpu_custom_call.1} parent=1 // pred_check_branch
      %18 = sbr.rel (0) target = $region9
    $region8: #{tpu_custom_call.1} parent=1 // pred_region
      _
    $region9: #{tpu_custom_call.1} parent=1 // pred_fallthru
      _
    // Predicated region
    $region10: #{tpu_custom_call.1} parent=1 // pred_check
      _
    $region11: #{tpu_custom_call.1} parent=1 // pred_check_branch
      %20 = sbr.rel (0) target = $region13
    $region12: #{tpu_custom_call.1} parent=1 // pred_region
      _
    $region13: #{tpu_custom_call.1} parent=1 // pred_fallthru
      _
    // Predicated region
    $region14: #{tpu_custom_call.1} parent=1 // pred_check
      _
    $region15: #{tpu_custom_call.1} parent=1 // pred_check_branch
      %22 = sbr.rel (0) target = $region17
    $region16: #{tpu_custom_call.1} parent=1 // pred_region
      _
    $region17: #{tpu_custom_call.1} parent=1 // pred_fallthru
      _
    // Predicated region
    $region18: #{tpu_custom_call.1} parent=1 // pred_check
      _
    $region19: #{tpu_custom_call.1} parent=1 // pred_check_branch
      %24 = sbr.rel (0) target = $region21
    $region20: #{tpu_custom_call.1} parent=1 // pred_region
      _
    $region21: #{tpu_custom_call.1} parent=1 // pred_fallthru
      _
    // Predicated region
    $region22: #{tpu_custom_call.1} parent=1 // pred_check
      _
    $region23: #{tpu_custom_call.1} parent=1 // pred_check_branch
      %26 = sbr.rel (0) target = $region25
    $region24: #{tpu_custom_call.1} parent=1 // pred_region
      _
    $region25: #{tpu_custom_call.1} parent=1 // pred_fallthru
      _
    // Predicated region
    $region26: #{tpu_custom_call.1} parent=1 // pred_check
      _
    $region27: #{tpu_custom_call.1} parent=1 // pred_check_branch
      %28 = sbr.rel (0) target = $region29
    $region28: #{tpu_custom_call.1} parent=1 // pred_region
      _
    $region29: #{tpu_custom_call.1} parent=1 // pred_fallthru
      _
    // Predicated region
    $region30: #{tpu_custom_call.1} parent=1 // pred_check
      _
    $region31: #{tpu_custom_call.1} parent=1 // pred_check_branch
      %30 = sbr.rel (0) target = $region33
    $region32: #{tpu_custom_call.1} parent=1 // pred_region
      _
    $region33: #{tpu_custom_call.1} parent=1 // pred_fallthru
      _
    // Predicated region
    $region34: #{tpu_custom_call.1} parent=1 // pred_check
      _
    $region35: #{tpu_custom_call.1} parent=1 // pred_check_branch
      %32 = sbr.rel (0) target = $region37
    $region36: #{tpu_custom_call.1} parent=1 // pred_region
      _
    $region37: #{tpu_custom_call.1} parent=1 // pred_fallthru
      _
    %v33 = vld [vmem:[%s0] sm:$0xff]
    %v34 = vld [vmem:[%s0 + $0x8] sm:$0xff]
    %v35 = vld [vmem:[%s0 + $0x10] sm:$0xff]
    %v36 = vld [vmem:[%s0 + $0x18] sm:$0xff]
    %v37 = vld [vmem:[%s0 + $0x20] sm:$0xff]
    %v38 = vld [vmem:[%s0 + $0x28] sm:$0xff]
    %v39 = vld [vmem:[%s0 + $0x30] sm:$0xff]
    %v40 = vld [vmem:[%s0 + $0x38] sm:$0xff]
    %v41 = vld [vmem:[%s0 + $0x40] sm:$0xff]
    %v42 = vld [vmem:[%s0 + $0x48] sm:$0xff]
    %v43 = vld [vmem:[%s0 + $0x50] sm:$0xff]
    %v44 = vld [vmem:[%s0 + $0x58] sm:$0xff]
    %v45 = vld [vmem:[%s0 + $0x60] sm:$0xff]
    %v46 = vld [vmem:[%s0 + $0x68] sm:$0xff]
    %v47 = vld [vmem:[%s0 + $0x70] sm:$0xff]
    %v48 = vld [vmem:[%s0 + $0x78] sm:$0xff]
    %v49 = vld [vmem:[%s2] sm:$0xff]
    %v50 = vld [vmem:[%s2 + $0x8] sm:$0xff]
    %v51 = vld [vmem:[%s2 + $0x10] sm:$0xff]
    %v52 = vld [vmem:[%s2 + $0x18] sm:$0xff]
    %v53 = vld [vmem:[%s2 + $0x20] sm:$0xff]
    %v54 = vld [vmem:[%s2 + $0x28] sm:$0xff]
    %v55 = vld [vmem:[%s2 + $0x30] sm:$0xff]
    %v56 = vld [vmem:[%s2 + $0x38] sm:$0xff]
    %v57 = vlaneseq
    %v58 = vand.u32 %v57, 127
    %v59 = vadd.s32 %v58, 128
    %vm60 = vcmp.lt.s32.totalorder %v58, 0
    %v61 = vsub.s32 0, %v58
    %v62 = vsel %vm60, %v61, %v58
    %v63 = vshrl.u32 %v62, 7
    %v64 = vand.u32 %v62, 127
    %v65 = vsub.s32 0, %v64
    %v66 = vsel %vm60, %v65, %v64
    %vm67 = vcmp.lt.s32.totalorder %v59, 0
    %v68 = vsub.s32 0, %v59
    %v69 = vsel %vm67, %v68, %v59
    %v70 = vshrl.u32 %v69, 7
    %v71 = vand.u32 %v69, 127
    %v72 = vsub.s32 0, %v71
    %v73 = vsel %vm67, %v72, %v71
    %vm74 = vcmp.ne.s32.totalorder %v66, 0
    %vm75 = vcmp.ne.s32.totalorder %v73, 0
    %vm76 = vcmp.lt.s32.totalorder %v66, 0
    %vm77 = vcmp.lt.s32.totalorder %v73, 0
    %vm78 = vmand %vm76, %vm74
    %vm79 = vmand %vm77, %vm75
    %v80 = vadd.s32 %v66, 128
    %v81 = vadd.s32 %v73, 128
    %v82 = vsel %vm78, %v80, %v66
    %v83 = vsel %vm79, %v81, %v73
    %vm84 = vcmp.ne.s32.totalorder %v82, 0
    %vm85 = vcmp.ne.s32.totalorder %v83, 0
    %v86 = vsel %vm84, 1, 0
    %v87 = vsel %vm85, 1, 0
    %v88 = vcvt.s32.f32 %v86
    %v89 = vcvt.s32.f32 %v87
    %vm90 = vcmp.ne.s32.totalorder %v82, 127
    %vm91 = vcmp.ne.s32.totalorder %v83, 127
    %v92 = vsel %vm90, 1, 0
    %v93 = vsel %vm91, 1, 0
    %v94 = vcvt.s32.f32 %v92
    %v95 = vcvt.s32.f32 %v93
    %v96 = vld [vmem:[%s1] sm:$0xff]
    %v97 = vld [vmem:[%s1 + $0x8] sm:$0xff]
    %v98 = vld [vmem:[%s1 + $0x10] sm:$0xff]
    %v99 = vld [vmem:[%s1 + $0x18] sm:$0xff]
    %v100 = vld [vmem:[%s1 + $0x20] sm:$0xff]
    %v101 = vld [vmem:[%s1 + $0x28] sm:$0xff]
    %v102 = vld [vmem:[%s1 + $0x30] sm:$0xff]
    %v103 = vld [vmem:[%s1 + $0x38] sm:$0xff]
    %v104 = vld [vmem:[%s1 + $0x40] sm:$0xff]
    %v105 = vld [vmem:[%s1 + $0x48] sm:$0xff]
    %v106 = vld [vmem:[%s1 + $0x50] sm:$0xff]
    %v107 = vld [vmem:[%s1 + $0x58] sm:$0xff]
    %v108 = vld [vmem:[%s1 + $0x60] sm:$0xff]
    %v109 = vld [vmem:[%s1 + $0x68] sm:$0xff]
    %v110 = vld [vmem:[%s1 + $0x70] sm:$0xff]
    %v111 = vld [vmem:[%s1 + $0x78] sm:$0xff]
    %v112 = vld [vmem:[%s1 + $0x80] sm:$0xff]
    %v113 = vld [vmem:[%s1 + $0x88] sm:$0xff]
    %v114 = vld [vmem:[%s1 + $0x90] sm:$0xff]
    %v115 = vld [vmem:[%s1 + $0x98] sm:$0xff]
    %v116 = vld [vmem:[%s1 + $0xa0] sm:$0xff]
    %v117 = vld [vmem:[%s1 + $0xa8] sm:$0xff]
    %v118 = vld [vmem:[%s1 + $0xb0] sm:$0xff]
    %v119 = vld [vmem:[%s1 + $0xb8] sm:$0xff]
    %vm120 = vcmask 523264
    %v122 = vsel %vm120, %v96, 0
    %v125 = vsel %vm120, %v97, 0
    %v128 = vsel %vm120, %v98, 0
    %v131 = vsel %vm120, %v99, 0
    %v134 = vsel %vm120, %v100, 0
    %v137 = vsel %vm120, %v101, 0
    %v140 = vsel %vm120, %v102, 0
    %v143 = vsel %vm120, %v103, 0
    %v146 = vsel %vm120, %v104, 0
    %v149 = vsel %vm120, %v105, 0
    %v152 = vsel %vm120, %v106, 0
    %v155 = vsel %vm120, %v107, 0
    %v158 = vsel %vm120, %v108, 0
    %v161 = vsel %vm120, %v109, 0
    %v164 = vsel %vm120, %v110, 0
    %v167 = vsel %vm120, %v111, 0
    %v170 = vsel %vm120, %v112, 0
    %v173 = vsel %vm120, %v113, 0
    %v176 = vsel %vm120, %v114, 0
    %v179 = vsel %vm120, %v115, 0
    %v182 = vsel %vm120, %v116, 0
    %v185 = vsel %vm120, %v117, 0
    %v188 = vsel %vm120, %v118, 0
    %v191 = vsel %vm120, %v119, 0
    %193 = vmatprep.subr.mxu0 0.0
    %194 = vmatpush1.msra.mxu0 0.0
    %195 = vmatprep.subr.mxu0 0.0
    %196 = vmatpush1.msra.mxu0 0.0
    %197 = vmatprep.subr.mxu0 0.0
    %198 = vmatpush1.msra.mxu0 0.0
    %199 = vmatprep.subr.mxu0 0.0
    %200 = vmatpush1.msra.mxu0 0.0
    %201 = vmatprep.subr.mxu0 0.0
    %202 = vmatpush1.msra.mxu0 0.0
    %203 = vmatprep.subr.mxu0 0.0
    %204 = vmatpush1.msra.mxu0 0.0
    %205 = vmatprep.subr.mxu0 0.0
    %206 = vmatpush1.msra.mxu0 0.0
    %207 = vmatprep.subr.mxu0 0.0
    %208 = vmatpush1.msra.mxu0 0.0
    %209 = vmatprep.subr.mxu0 %v48
    %210 = vmatpush1.msra.mxu0 %v47
    %211 = vmatprep.subr.mxu0 %v46
    %212 = vmatpush1.msra.mxu0 %v45
    %213 = vmatprep.subr.mxu0 %v44
    %214 = vmatpush1.msra.mxu0 %v43
    %215 = vmatprep.subr.mxu0 %v42
    %216 = vmatpush1.msra.mxu0 %v41
    %217 = vmatprep.subr.mxu0 %v40
    %218 = vmatpush1.msra.mxu0 %v39
    %219 = vmatprep.subr.mxu0 %v38
    %220 = vmatpush1.msra.mxu0 %v37
    %221 = vmatprep.subr.mxu0 %v36
    %222 = vmatpush1.msra.mxu0 %v35
    %223 = vmatprep.subr.mxu0 %v34
    %224 = vmatpush1.msra.mxu0 %v33
    %225 = vmatprep.subr.mxu0 0.0
    %226 = vmatpush2.msra.mxu0 0.0
    %227 = vmatprep.subr.mxu0 0.0
    %228 = vmatpush2.msra.mxu0 0.0
    %229 = vmatprep.subr.mxu0 0.0
    %230 = vmatpush2.msra.mxu0 0.0
    %231 = vmatprep.subr.mxu0 0.0
    %232 = vmatpush2.msra.mxu0 0.0
    %233 = vmatprep.subr.mxu0 0.0
    %234 = vmatpush2.msra.mxu0 0.0
    %235 = vmatprep.subr.mxu0 0.0
    %236 = vmatpush2.msra.mxu0 0.0
    %237 = vmatprep.subr.mxu0 0.0
    %238 = vmatpush2.msra.mxu0 0.0
    %239 = vmatprep.subr.mxu0 0.0
    %240 = vmatpush2.msra.mxu0 0.0
    %241 = vmatprep.subr.mxu0 0.0
    %242 = vmatpush2.msra.mxu0 0.0
    %243 = vmatprep.subr.mxu0 0.0
    %244 = vmatpush2.msra.mxu0 0.0
    %245 = vmatprep.subr.mxu0 0.0
    %246 = vmatpush2.msra.mxu0 0.0
    %247 = vmatprep.subr.mxu0 0.0
    %248 = vmatpush2.msra.mxu0 0.0
    %249 = vmatprep.subr.mxu0 0.0
    %250 = vmatpush2.msra.mxu0 0.0
    %251 = vmatprep.subr.mxu0 0.0
    %252 = vmatpush2.msra.mxu0 0.0
    %253 = vmatprep.subr.mxu0 0.0
    %254 = vmatpush2.msra.mxu0 0.0
    %255 = vmatprep.subr.mxu0 0.0
    %256 = vmatpush2.msra.mxu0 0.0
    %257 = vmatprep.mubr.f32.mxu0 0.0
    %258 = vmatmul.mubr.f32.gmra.mxu0 %v122
    %v259 = vpop.f32.mrf.mxu0
    %v260 = vadd.f32 0.0, %v259
    %v261 = vpop.f32.mrf.mxu0
    %v262 = vadd.f32 0.0, %v261
    %263 = vmatprep.mubr.f32.mxu0 0.0
    %264 = vmatmul.mubr.f32.gmra.mxu0 %v125
    %v265 = vpop.f32.mrf.mxu0
    %v266 = vadd.f32 0.0, %v265
    %v267 = vpop.f32.mrf.mxu0
    %v268 = vadd.f32 0.0, %v267
    %269 = vmatprep.mubr.f32.mxu0 0.0
    %270 = vmatmul.mubr.f32.gmra.mxu0 %v128
    %v271 = vpop.f32.mrf.mxu0
    %v272 = vadd.f32 0.0, %v271
    %v273 = vpop.f32.mrf.mxu0
    %v274 = vadd.f32 0.0, %v273
    %275 = vmatprep.mubr.f32.mxu0 0.0
    %276 = vmatmul.mubr.f32.gmra.mxu0 %v131
    %v277 = vpop.f32.mrf.mxu0
    %v278 = vadd.f32 0.0, %v277
    %v279 = vpop.f32.mrf.mxu0
    %v280 = vadd.f32 0.0, %v279
    %281 = vmatprep.mubr.f32.mxu0 0.0
    %282 = vmatmul.mubr.f32.gmra.mxu0 %v134
    %v283 = vpop.f32.mrf.mxu0
    %v284 = vadd.f32 0.0, %v283
    %v285 = vpop.f32.mrf.mxu0
    %v286 = vadd.f32 0.0, %v285
    %287 = vmatprep.mubr.f32.mxu0 0.0
    %288 = vmatmul.mubr.f32.gmra.mxu0 %v137
    %v289 = vpop.f32.mrf.mxu0
    %v290 = vadd.f32 0.0, %v289
    %v291 = vpop.f32.mrf.mxu0
    %v292 = vadd.f32 0.0, %v291
    %293 = vmatprep.mubr.f32.mxu0 0.0
    %294 = vmatmul.mubr.f32.gmra.mxu0 %v140
    %v295 = vpop.f32.mrf.mxu0
    %v296 = vadd.f32 0.0, %v295
    %v297 = vpop.f32.mrf.mxu0
    %v298 = vadd.f32 0.0, %v297
    %299 = vmatprep.mubr.f32.mxu0 0.0
    %300 = vmatmul.mubr.f32.gmra.mxu0 %v143
    %v301 = vpop.f32.mrf.mxu0
    %v302 = vadd.f32 0.0, %v301
    %v303 = vpop.f32.mrf.mxu0
    %v304 = vadd.f32 0.0, %v303
    %305 = vmatprep.mubr.f32.mxu0 0.0
    %306 = vmatmul.mubr.f32.gmra.mxu0 %v146
    %v307 = vpop.f32.mrf.mxu0
    %v308 = vadd.f32 0.0, %v307
    %v309 = vpop.f32.mrf.mxu0
    %v310 = vadd.f32 0.0, %v309
    %311 = vmatprep.mubr.f32.mxu0 0.0
    %312 = vmatmul.mubr.f32.gmra.mxu0 %v149
    %v313 = vpop.f32.mrf.mxu0
    %v314 = vadd.f32 0.0, %v313
    %v315 = vpop.f32.mrf.mxu0
    %v316 = vadd.f32 0.0, %v315
    %317 = vmatprep.mubr.f32.mxu0 0.0
    %318 = vmatmul.mubr.f32.gmra.mxu0 %v152
    %v319 = vpop.f32.mrf.mxu0
    %v320 = vadd.f32 0.0, %v319
    %v321 = vpop.f32.mrf.mxu0
    %v322 = vadd.f32 0.0, %v321
    %323 = vmatprep.mubr.f32.mxu0 0.0
    %324 = vmatmul.mubr.f32.gmra.mxu0 %v155
    %v325 = vpop.f32.mrf.mxu0
    %v326 = vadd.f32 0.0, %v325
    %v327 = vpop.f32.mrf.mxu0
    %v328 = vadd.f32 0.0, %v327
    %329 = vmatprep.mubr.f32.mxu0 0.0
    %330 = vmatmul.mubr.f32.gmra.mxu0 %v158
    %v331 = vpop.f32.mrf.mxu0
    %v332 = vadd.f32 0.0, %v331
    %v333 = vpop.f32.mrf.mxu0
    %v334 = vadd.f32 0.0, %v333
    %335 = vmatprep.mubr.f32.mxu0 0.0
    %336 = vmatmul.mubr.f32.gmra.mxu0 %v161
    %v337 = vpop.f32.mrf.mxu0
    %v338 = vadd.f32 0.0, %v337
    %v339 = vpop.f32.mrf.mxu0
    %v340 = vadd.f32 0.0, %v339
    %341 = vmatprep.mubr.f32.mxu0 0.0
    %342 = vmatmul.mubr.f32.gmra.mxu0 %v164
    %v343 = vpop.f32.mrf.mxu0
    %v344 = vadd.f32 0.0, %v343
    %v345 = vpop.f32.mrf.mxu0
    %v346 = vadd.f32 0.0, %v345
    %347 = vmatprep.mubr.f32.mxu0 0.0
    %348 = vmatmul.mubr.f32.gmra.mxu0 %v167
    %v349 = vpop.f32.mrf.mxu0
    %v350 = vadd.f32 0.0, %v349
    %v351 = vpop.f32.mrf.mxu0
    %v352 = vadd.f32 0.0, %v351
    %353 = vmatprep.mubr.f32.mxu0 0.0
    %354 = vmatmul.mubr.f32.gmra.mxu0 %v170
    %v355 = vpop.f32.mrf.mxu0
    %v356 = vadd.f32 0.0, %v355
    %v357 = vpop.f32.mrf.mxu0
    %v358 = vadd.f32 0.0, %v357
    %359 = vmatprep.mubr.f32.mxu0 0.0
    %360 = vmatmul.mubr.f32.gmra.mxu0 %v173
    %v361 = vpop.f32.mrf.mxu0
    %v362 = vadd.f32 0.0, %v361
    %v363 = vpop.f32.mrf.mxu0
    %v364 = vadd.f32 0.0, %v363
    %365 = vmatprep.mubr.f32.mxu0 0.0
    %366 = vmatmul.mubr.f32.gmra.mxu0 %v176
    %v367 = vpop.f32.mrf.mxu0
    %v368 = vadd.f32 0.0, %v367
    %v369 = vpop.f32.mrf.mxu0
    %v370 = vadd.f32 0.0, %v369
    %371 = vmatprep.mubr.f32.mxu0 0.0
    %372 = vmatmul.mubr.f32.gmra.mxu0 %v179
    %v373 = vpop.f32.mrf.mxu0
    %v374 = vadd.f32 0.0, %v373
    %v375 = vpop.f32.mrf.mxu0
    %v376 = vadd.f32 0.0, %v375
    %377 = vmatprep.mubr.f32.mxu0 0.0
    %378 = vmatmul.mubr.f32.gmra.mxu0 %v182
    %v379 = vpop.f32.mrf.mxu0
    %v380 = vadd.f32 0.0, %v379
    %v381 = vpop.f32.mrf.mxu0
    %v382 = vadd.f32 0.0, %v381
    %383 = vmatprep.mubr.f32.mxu0 0.0
    %384 = vmatmul.mubr.f32.gmra.mxu0 %v185
    %v385 = vpop.f32.mrf.mxu0
    %v386 = vadd.f32 0.0, %v385
    %v387 = vpop.f32.mrf.mxu0
    %v388 = vadd.f32 0.0, %v387
    %389 = vmatprep.mubr.f32.mxu0 0.0
    %390 = vmatmul.mubr.f32.gmra.mxu0 %v188
    %v391 = vpop.f32.mrf.mxu0
    %v392 = vadd.f32 0.0, %v391
    %v393 = vpop.f32.mrf.mxu0
    %v394 = vadd.f32 0.0, %v393
    %395 = vmatprep.mubr.f32.mxu0 0.0
    %396 = vmatmul.mubr.f32.gmra.mxu0 %v191
    %v397 = vpop.f32.mrf.mxu0
    %v398 = vadd.f32 0.0, %v397
    %v399 = vpop.f32.mrf.mxu0
    %v400 = vadd.f32 0.0, %v399
    %401 = vdwg.mxu0
    %402 = vrot.lane.b32.xlu0 %v260, 1
    %v403 = vpop.permute.xlu0 %402
    %404 = vrot.lane.b32.xlu0 %v266, 1
    %v405 = vpop.permute.xlu0 %404
    %406 = vrot.lane.b32.xlu0 %v272, 1
    %v407 = vpop.permute.xlu0 %406
    %408 = vrot.lane.b32.xlu0 %v278, 1
    %v409 = vpop.permute.xlu0 %408
    %410 = vrot.lane.b32.xlu0 %v284, 1
    %v411 = vpop.permute.xlu0 %410
    %412 = vrot.lane.b32.xlu0 %v290, 1
    %v413 = vpop.permute.xlu0 %412
    %414 = vrot.lane.b32.xlu0 %v296, 1
    %v415 = vpop.permute.xlu0 %414
    %416 = vrot.lane.b32.xlu0 %v302, 1
    %v417 = vpop.permute.xlu0 %416
    %418 = vrot.lane.b32.xlu0 %v262, 1
    %v419 = vpop.permute.xlu0 %418
    %420 = vrot.lane.b32.xlu0 %v268, 1
    %v421 = vpop.permute.xlu0 %420
    %422 = vrot.lane.b32.xlu0 %v274, 1
    %v423 = vpop.permute.xlu0 %422
    %424 = vrot.lane.b32.xlu0 %v280, 1
    %v425 = vpop.permute.xlu0 %424
    %426 = vrot.lane.b32.xlu0 %v286, 1
    %v427 = vpop.permute.xlu0 %426
    %428 = vrot.lane.b32.xlu0 %v292, 1
    %v429 = vpop.permute.xlu0 %428
    %430 = vrot.lane.b32.xlu0 %v298, 1
    %v431 = vpop.permute.xlu0 %430
    %432 = vrot.lane.b32.xlu0 %v304, 1
    %v433 = vpop.permute.xlu0 %432
    %vm434 = vcmp.lt.s32.totalorder %v58, 1
    %v435 = vsel %vm434, %v403, %v419
    %v436 = vsel %vm434, %v405, %v421
    %v437 = vsel %vm434, %v407, %v423
    %v438 = vsel %vm434, %v409, %v425
    %v439 = vsel %vm434, %v411, %v427
    %v440 = vsel %vm434, %v413, %v429
    %v441 = vsel %vm434, %v415, %v431
    %v442 = vsel %vm434, %v417, %v433
    %v443 = vsel %vm434, %v419, %v403
    %v444 = vsel %vm434, %v421, %v405
    %v445 = vsel %vm434, %v423, %v407
    %v446 = vsel %vm434, %v425, %v409
    %v447 = vsel %vm434, %v427, %v411
    %v448 = vsel %vm434, %v429, %v413
    %v449 = vsel %vm434, %v431, %v415
    %v450 = vsel %vm434, %v433, %v417
    %v451 = vmul.f32 %v88, %v443
    %v452 = vmul.f32 %v89, %v435
    %v453 = vmul.f32 %v88, %v444
    %v454 = vmul.f32 %v89, %v436
    %v455 = vmul.f32 %v88, %v445
    %v456 = vmul.f32 %v89, %v437
    %v457 = vmul.f32 %v88, %v446
    %v458 = vmul.f32 %v89, %v438
    %v459 = vmul.f32 %v88, %v447
    %v460 = vmul.f32 %v89, %v439
    %v461 = vmul.f32 %v88, %v448
    %v462 = vmul.f32 %v89, %v440
    %v463 = vmul.f32 %v88, %v449
    %v464 = vmul.f32 %v89, %v441
    %v465 = vmul.f32 %v88, %v450
    %v466 = vmul.f32 %v89, %v442
    %v467 = vadd.f32 %v308, %v451
    %v468 = vadd.f32 %v310, %v452
    %v469 = vadd.f32 %v314, %v453
    %v470 = vadd.f32 %v316, %v454
    %v471 = vadd.f32 %v320, %v455
    %v472 = vadd.f32 %v322, %v456
    %v473 = vadd.f32 %v326, %v457
    %v474 = vadd.f32 %v328, %v458
    %v475 = vadd.f32 %v332, %v459
    %v476 = vadd.f32 %v334, %v460
    %v477 = vadd.f32 %v338, %v461
    %v478 = vadd.f32 %v340, %v462
    %v479 = vadd.f32 %v344, %v463
    %v480 = vadd.f32 %v346, %v464
    %v481 = vadd.f32 %v350, %v465
    %v482 = vadd.f32 %v352, %v466
    %483 = vrot.lane.b32.xlu0 %v356, 127
    %v484 = vpop.permute.xlu0 %483
    %485 = vrot.lane.b32.xlu0 %v362, 127
    %v486 = vpop.permute.xlu0 %485
    %487 = vrot.lane.b32.xlu0 %v368, 127
    %v488 = vpop.permute.xlu0 %487
    %489 = vrot.lane.b32.xlu0 %v374, 127
    %v490 = vpop.permute.xlu0 %489
    %491 = vrot.lane.b32.xlu0 %v380, 127
    %v492 = vpop.permute.xlu0 %491
    %493 = vrot.lane.b32.xlu0 %v386, 127
    %v494 = vpop.permute.xlu0 %493
    %495 = vrot.lane.b32.xlu0 %v392, 127
    %v496 = vpop.permute.xlu0 %495
    %497 = vrot.lane.b32.xlu0 %v398, 127
    %v498 = vpop.permute.xlu0 %497
    %499 = vrot.lane.b32.xlu0 %v358, 127
    %v500 = vpop.permute.xlu0 %499
    %501 = vrot.lane.b32.xlu0 %v364, 127
    %v502 = vpop.permute.xlu0 %501
    %503 = vrot.lane.b32.xlu0 %v370, 127
    %v504 = vpop.permute.xlu0 %503
    %505 = vrot.lane.b32.xlu0 %v376, 127
    %v506 = vpop.permute.xlu0 %505
    %507 = vrot.lane.b32.xlu0 %v382, 127
    %v508 = vpop.permute.xlu0 %507
    %509 = vrot.lane.b32.xlu0 %v388, 127
    %v510 = vpop.permute.xlu0 %509
    %511 = vrot.lane.b32.xlu0 %v394, 127
    %v512 = vpop.permute.xlu0 %511
    %513 = vrot.lane.b32.xlu0 %v400, 127
    %v514 = vpop.permute.xlu0 %513
    %vm515 = vcmp.lt.s32.totalorder %v58, 127
    %v516 = vsel %vm515, %v484, %v500
    %v517 = vsel %vm515, %v486, %v502
    %v518 = vsel %vm515, %v488, %v504
    %v519 = vsel %vm515, %v490, %v506
    %v520 = vsel %vm515, %v492, %v508
    %v521 = vsel %vm515, %v494, %v510
    %v522 = vsel %vm515, %v496, %v512
    %v523 = vsel %vm515, %v498, %v514
    %v524 = vsel %vm515, %v500, %v484
    %v525 = vsel %vm515, %v502, %v486
    %v526 = vsel %vm515, %v504, %v488
    %v527 = vsel %vm515, %v506, %v490
    %v528 = vsel %vm515, %v508, %v492
    %v529 = vsel %vm515, %v510, %v494
    %v530 = vsel %vm515, %v512, %v496
    %v531 = vsel %vm515, %v514, %v498
    %v532 = vmul.f32 %v94, %v516
    %v533 = vmul.f32 %v95, %v524
    %v534 = vmul.f32 %v94, %v517
    %v535 = vmul.f32 %v95, %v525
    %v536 = vmul.f32 %v94, %v518
    %v537 = vmul.f32 %v95, %v526
    %v538 = vmul.f32 %v94, %v519
    %v539 = vmul.f32 %v95, %v527
    %v540 = vmul.f32 %v94, %v520
    %v541 = vmul.f32 %v95, %v528
    %v542 = vmul.f32 %v94, %v521
    %v543 = vmul.f32 %v95, %v529
    %v544 = vmul.f32 %v94, %v522
    %v545 = vmul.f32 %v95, %v530
    %v546 = vmul.f32 %v94, %v523
    %v547 = vmul.f32 %v95, %v531
    %v548 = vadd.f32 %v467, %v532
    %v549 = vadd.f32 %v468, %v533
    %v550 = vadd.f32 %v469, %v534
    %v551 = vadd.f32 %v470, %v535
    %v552 = vadd.f32 %v471, %v536
    %v553 = vadd.f32 %v472, %v537
    %v554 = vadd.f32 %v473, %v538
    %v555 = vadd.f32 %v474, %v539
    %v556 = vadd.f32 %v475, %v540
    %v557 = vadd.f32 %v476, %v541
    %v558 = vadd.f32 %v477, %v542
    %v559 = vadd.f32 %v478, %v543
    %v560 = vadd.f32 %v479, %v544
    %v561 = vadd.f32 %v480, %v545
    %v562 = vadd.f32 %v481, %v546
    %v563 = vadd.f32 %v482, %v547
    %v564 = vld [vmem:[%s5] sm:$0xff]
    %v565 = vld [vmem:[%s5 + $0x8] sm:$0xff]
    %v566 = vld [vmem:[%s5 + $0x10] sm:$0xff]
    %v567 = vld [vmem:[%s5 + $0x18] sm:$0xff]
    %v568 = vld [vmem:[%s5 + $0x20] sm:$0xff]
    %v569 = vld [vmem:[%s5 + $0x28] sm:$0xff]
    %v570 = vld [vmem:[%s5 + $0x30] sm:$0xff]
    %v571 = vld [vmem:[%s5 + $0x38] sm:$0xff]
    %v572 = vld [vmem:[%s5 + $0x40] sm:$0xff]
    %v573 = vld [vmem:[%s5 + $0x48] sm:$0xff]
    %v574 = vld [vmem:[%s5 + $0x50] sm:$0xff]
    %v575 = vld [vmem:[%s5 + $0x58] sm:$0xff]
    %v576 = vld [vmem:[%s5 + $0x60] sm:$0xff]
    %v577 = vld [vmem:[%s5 + $0x68] sm:$0xff]
    %v578 = vld [vmem:[%s5 + $0x70] sm:$0xff]
    %v579 = vld [vmem:[%s5 + $0x78] sm:$0xff]
    %v580 = vld [vmem:[%s5 + $0x80] sm:$0xff]
    %v581 = vld [vmem:[%s5 + $0x88] sm:$0xff]
    %v582 = vld [vmem:[%s5 + $0x90] sm:$0xff]
    %v583 = vld [vmem:[%s5 + $0x98] sm:$0xff]
    %v584 = vld [vmem:[%s5 + $0xa0] sm:$0xff]
    %v585 = vld [vmem:[%s5 + $0xa8] sm:$0xff]
    %v586 = vld [vmem:[%s5 + $0xb0] sm:$0xff]
    %v587 = vld [vmem:[%s5 + $0xb8] sm:$0xff]
    %v588 = vld [vmem:[%s5 + $0xc0] sm:$0xff]
    %v589 = vld [vmem:[%s5 + $0xc8] sm:$0xff]
    %v590 = vld [vmem:[%s5 + $0xd0] sm:$0xff]
    %v591 = vld [vmem:[%s5 + $0xd8] sm:$0xff]
    %v592 = vld [vmem:[%s5 + $0xe0] sm:$0xff]
    %v593 = vld [vmem:[%s5 + $0xe8] sm:$0xff]
    %v594 = vld [vmem:[%s5 + $0xf0] sm:$0xff]
    %v595 = vld [vmem:[%s5 + $0xf8] sm:$0xff]
    %v596 = vmul.f32 %v49, 128.0
    %v597 = vmul.f32 %v50, 128.0
    %v598 = vmul.f32 %v51, 128.0
    %v599 = vmul.f32 %v52, 128.0
    %v600 = vmul.f32 %v53, 128.0
    %v601 = vmul.f32 %v54, 128.0
    %v602 = vmul.f32 %v55, 128.0
    %v603 = vmul.f32 %v56, 128.0
    %605 = vset.pattern.permute.xlu0 0
    %606 = vperm.xlu0 %605, %v596
    %v607 = vpop.permute.xlu0 %606
    %610 = vset.pattern.permute.xlu0 0
    %611 = vperm.xlu0 %610, %v597
    %v612 = vpop.permute.xlu0 %611
    %615 = vset.pattern.permute.xlu0 0
    %616 = vperm.xlu0 %615, %v598
    %v617 = vpop.permute.xlu0 %616
    %620 = vset.pattern.permute.xlu0 0
    %621 = vperm.xlu0 %620, %v599
    %v622 = vpop.permute.xlu0 %621
    %625 = vset.pattern.permute.xlu0 0
    %626 = vperm.xlu0 %625, %v600
    %v627 = vpop.permute.xlu0 %626
    %630 = vset.pattern.permute.xlu0 0
    %631 = vperm.xlu0 %630, %v601
    %v632 = vpop.permute.xlu0 %631
    %635 = vset.pattern.permute.xlu0 0
    %636 = vperm.xlu0 %635, %v602
    %v637 = vpop.permute.xlu0 %636
    %640 = vset.pattern.permute.xlu0 0
    %641 = vperm.xlu0 %640, %v603
    %v642 = vpop.permute.xlu0 %641
    %644 = vmatprep.subr.mxu0 0.0
    %645 = vmatpush1.msra.mxu0 %v579
    %646 = vmatprep.subr.mxu0 0.0
    %647 = vmatpush1.msra.mxu0 %v578
    %648 = vmatprep.subr.mxu0 0.0
    %649 = vmatpush1.msra.mxu0 %v577
    %650 = vmatprep.subr.mxu0 0.0
    %651 = vmatpush1.msra.mxu0 %v576
    %652 = vmatprep.subr.mxu0 0.0
    %653 = vmatpush1.msra.mxu0 %v575
    %654 = vmatprep.subr.mxu0 0.0
    %655 = vmatpush1.msra.mxu0 %v574
    %656 = vmatprep.subr.mxu0 0.0
    %657 = vmatpush1.msra.mxu0 %v573
    %658 = vmatprep.subr.mxu0 0.0
    %659 = vmatpush1.msra.mxu0 %v572
    %660 = vmatprep.subr.mxu0 0.0
    %661 = vmatpush1.msra.mxu0 %v571
    %662 = vmatprep.subr.mxu0 0.0
    %663 = vmatpush1.msra.mxu0 %v570
    %664 = vmatprep.subr.mxu0 0.0
    %665 = vmatpush1.msra.mxu0 %v569
    %666 = vmatprep.subr.mxu0 0.0
    %667 = vmatpush1.msra.mxu0 %v568
    %668 = vmatprep.subr.mxu0 0.0
    %669 = vmatpush1.msra.mxu0 %v567
    %670 = vmatprep.subr.mxu0 0.0
    %671 = vmatpush1.msra.mxu0 %v566
    %672 = vmatprep.subr.mxu0 0.0
    %673 = vmatpush1.msra.mxu0 %v565
    %674 = vmatprep.subr.mxu0 0.0
    %675 = vmatpush1.msra.mxu0 %v564
    %676 = vmatprep.subr.mxu0 0.0
    %677 = vmatpush2.msra.mxu0 %v595
    %678 = vmatprep.subr.mxu0 0.0
    %679 = vmatpush2.msra.mxu0 %v594
    %680 = vmatprep.subr.mxu0 0.0
    %681 = vmatpush2.msra.mxu0 %v593
    %682 = vmatprep.subr.mxu0 0.0
    %683 = vmatpush2.msra.mxu0 %v592
    %684 = vmatprep.subr.mxu0 0.0
    %685 = vmatpush2.msra.mxu0 %v591
    %686 = vmatprep.subr.mxu0 0.0
    %687 = vmatpush2.msra.mxu0 %v590
    %688 = vmatprep.subr.mxu0 0.0
    %689 = vmatpush2.msra.mxu0 %v589
    %690 = vmatprep.subr.mxu0 0.0
    %691 = vmatpush2.msra.mxu0 %v588
    %692 = vmatprep.subr.mxu0 0.0
    %693 = vmatpush2.msra.mxu0 %v587
    %694 = vmatprep.subr.mxu0 0.0
    %695 = vmatpush2.msra.mxu0 %v586
    %696 = vmatprep.subr.mxu0 0.0
    %697 = vmatpush2.msra.mxu0 %v585
    %698 = vmatprep.subr.mxu0 0.0
    %699 = vmatpush2.msra.mxu0 %v584
    %700 = vmatprep.subr.mxu0 0.0
    %701 = vmatpush2.msra.mxu0 %v583
    %702 = vmatprep.subr.mxu0 0.0
    %703 = vmatpush2.msra.mxu0 %v582
    %704 = vmatprep.subr.mxu0 0.0
    %705 = vmatpush2.msra.mxu0 %v581
    %706 = vmatprep.subr.mxu0 0.0
    %707 = vmatpush2.msra.mxu0 %v580
    %708 = vmatprep.mubr.f32.mxu0 %v549
    %709 = vmatmul.mubr.f32.gmra.mxu0 %v548
    %v710 = vpop.f32.mrf.mxu0
    %v711 = vadd.f32 %v607, %v710
    %v712 = vpop.f32.mrf.mxu0
    %713 = vmatprep.mubr.f32.mxu0 %v551
    %714 = vmatmul.mubr.f32.gmra.mxu0 %v550
    %v715 = vpop.f32.mrf.mxu0
    %v716 = vadd.f32 %v612, %v715
    %v717 = vpop.f32.mrf.mxu0
    %718 = vmatprep.mubr.f32.mxu0 %v553
    %719 = vmatmul.mubr.f32.gmra.mxu0 %v552
    %v720 = vpop.f32.mrf.mxu0
    %v721 = vadd.f32 %v617, %v720
    %v722 = vpop.f32.mrf.mxu0
    %723 = vmatprep.mubr.f32.mxu0 %v555
    %724 = vmatmul.mubr.f32.gmra.mxu0 %v554
    %v725 = vpop.f32.mrf.mxu0
    %v726 = vadd.f32 %v622, %v725
    %v727 = vpop.f32.mrf.mxu0
    %728 = vmatprep.mubr.f32.mxu0 %v557
    %729 = vmatmul.mubr.f32.gmra.mxu0 %v556
    %v730 = vpop.f32.mrf.mxu0
    %v731 = vadd.f32 %v627, %v730
    %v732 = vpop.f32.mrf.mxu0
    %733 = vmatprep.mubr.f32.mxu0 %v559
    %734 = vmatmul.mubr.f32.gmra.mxu0 %v558
    %v735 = vpop.f32.mrf.mxu0
    %v736 = vadd.f32 %v632, %v735
    %v737 = vpop.f32.mrf.mxu0
    %738 = vmatprep.mubr.f32.mxu0 %v561
    %739 = vmatmul.mubr.f32.gmra.mxu0 %v560
    %v740 = vpop.f32.mrf.mxu0
    %v741 = vadd.f32 %v637, %v740
    %v742 = vpop.f32.mrf.mxu0
    %743 = vmatprep.mubr.f32.mxu0 %v563
    %744 = vmatmul.mubr.f32.gmra.mxu0 %v562
    %v745 = vpop.f32.mrf.mxu0
    %v746 = vadd.f32 %v642, %v745
    %v747 = vpop.f32.mrf.mxu0
    %748 = vdwg.mxu0
    %v749 = vld [vmem:[%s3] sm:$0xff]
    %v750 = vld [vmem:[%s3 + $0x8] sm:$0xff]
    %v751 = vld [vmem:[%s3 + $0x10] sm:$0xff]
    %v752 = vld [vmem:[%s3 + $0x18] sm:$0xff]
    %v754 = vsel %vm120, %v749, 0
    %v757 = vsel %vm120, %v750, 0
    %v760 = vsel %vm120, %v751, 0
    %v763 = vsel %vm120, %v752, 0
    %765 = vmatprep.subr.mxu0 0.0
    %766 = vmatpush1.msra.mxu0 0.0
    %767 = vmatprep.subr.mxu0 0.0
    %768 = vmatpush1.msra.mxu0 0.0
    %769 = vmatprep.subr.mxu0 0.0
    %770 = vmatpush1.msra.mxu0 0.0
    %771 = vmatprep.subr.mxu0 0.0
    %772 = vmatpush1.msra.mxu0 0.0
    %773 = vmatprep.subr.mxu0 0.0
    %774 = vmatpush1.msra.mxu0 0.0
    %775 = vmatprep.subr.mxu0 0.0
    %776 = vmatpush1.msra.mxu0 0.0
    %777 = vmatprep.subr.mxu0 0.0
    %778 = vmatpush1.msra.mxu0 0.0
    %779 = vmatprep.subr.mxu0 0.0
    %780 = vmatpush1.msra.mxu0 0.0
    %781 = vmatprep.subr.mxu0 0.0
    %782 = vmatpush1.msra.mxu0 %v746
    %783 = vmatprep.subr.mxu0 0.0
    %784 = vmatpush1.msra.mxu0 %v741
    %785 = vmatprep.subr.mxu0 0.0
    %786 = vmatpush1.msra.mxu0 %v736
    %787 = vmatprep.subr.mxu0 0.0
    %788 = vmatpush1.msra.mxu0 %v731
    %789 = vmatprep.subr.mxu0 0.0
    %790 = vmatpush1.msra.mxu0 %v726
    %791 = vmatprep.subr.mxu0 0.0
    %792 = vmatpush1.msra.mxu0 %v721
    %793 = vmatprep.subr.mxu0 0.0
    %794 = vmatpush1.msra.mxu0 %v716
    %795 = vmatprep.subr.mxu0 0.0
    %796 = vmatpush1.msra.mxu0 %v711
    %797 = vmatprep.subr.mxu0 0.0
    %798 = vmatpush2.msra.mxu0 0.0
    %799 = vmatprep.subr.mxu0 0.0
    %800 = vmatpush2.msra.mxu0 0.0
    %801 = vmatprep.subr.mxu0 0.0
    %802 = vmatpush2.msra.mxu0 0.0
    %803 = vmatprep.subr.mxu0 0.0
    %804 = vmatpush2.msra.mxu0 0.0
    %805 = vmatprep.subr.mxu0 0.0
    %806 = vmatpush2.msra.mxu0 0.0
    %807 = vmatprep.subr.mxu0 0.0
    %808 = vmatpush2.msra.mxu0 0.0
    %809 = vmatprep.subr.mxu0 0.0
    %810 = vmatpush2.msra.mxu0 0.0
    %811 = vmatprep.subr.mxu0 0.0
    %812 = vmatpush2.msra.mxu0 0.0
    %813 = vmatprep.subr.mxu0 0.0
    %814 = vmatpush2.msra.mxu0 0.0
    %815 = vmatprep.subr.mxu0 0.0
    %816 = vmatpush2.msra.mxu0 0.0
    %817 = vmatprep.subr.mxu0 0.0
    %818 = vmatpush2.msra.mxu0 0.0
    %819 = vmatprep.subr.mxu0 0.0
    %820 = vmatpush2.msra.mxu0 0.0
    %821 = vmatprep.subr.mxu0 0.0
    %822 = vmatpush2.msra.mxu0 0.0
    %823 = vmatprep.subr.mxu0 0.0
    %824 = vmatpush2.msra.mxu0 0.0
    %825 = vmatprep.subr.mxu0 0.0
    %826 = vmatpush2.msra.mxu0 0.0
    %827 = vmatprep.subr.mxu0 0.0
    %828 = vmatpush2.msra.mxu0 0.0
    %829 = vmatprep.mubr.f32.mxu0 0.0
    %830 = vmatmul.mubr.f32.gmra.mxu0 %v754
    %v831 = vpop.f32.mrf.mxu0
    %v832 = vadd.f32 0.0, %v831
    %v833 = vpop.f32.mrf.mxu0
    %834 = vmatprep.mubr.f32.mxu0 0.0
    %835 = vmatmul.mubr.f32.gmra.mxu0 %v757
    %v836 = vpop.f32.mrf.mxu0
    %v837 = vadd.f32 0.0, %v836
    %v838 = vpop.f32.mrf.mxu0
    %839 = vmatprep.mubr.f32.mxu0 0.0
    %840 = vmatmul.mubr.f32.gmra.mxu0 %v760
    %v841 = vpop.f32.mrf.mxu0
    %v842 = vadd.f32 0.0, %v841
    %v843 = vpop.f32.mrf.mxu0
    %844 = vmatprep.mubr.f32.mxu0 0.0
    %845 = vmatmul.mubr.f32.gmra.mxu0 %v763
    %v846 = vpop.f32.mrf.mxu0
    %v847 = vadd.f32 0.0, %v846
    %v848 = vpop.f32.mrf.mxu0
    %849 = vdwg.mxu0
    %v850 = vmul.f32 %v832, 0.00390625
    %v851 = vmul.f32 %v837, 0.00390625
    %v852 = vmul.f32 %v842, 0.00390625
    %v853 = vmul.f32 %v847, 0.00390625
    %v854 = vld [vmem:[%s4] sm:$0xff]
    %v855 = vld [vmem:[%s4 + $0x8] sm:$0xff]
    %v856 = vld [vmem:[%s4 + $0x10] sm:$0xff]
    %v857 = vld [vmem:[%s4 + $0x18] sm:$0xff]
    %v858 = vld [vmem:[%s4 + $0x20] sm:$0xff]
    %v859 = vld [vmem:[%s4 + $0x28] sm:$0xff]
    %v860 = vld [vmem:[%s4 + $0x30] sm:$0xff]
    %v861 = vld [vmem:[%s4 + $0x38] sm:$0xff]
    %vm862 = vcmask 261120
    %v864 = vsel %vm862, %v854, 0
    %v867 = vsel %vm862, %v855, 0
    %v870 = vsel %vm862, %v856, 0
    %v873 = vsel %vm862, %v857, 0
    %v876 = vsel %vm862, %v858, 0
    %v879 = vsel %vm862, %v859, 0
    %v882 = vsel %vm862, %v860, 0
    %v885 = vsel %vm862, %v861, 0
    %887 = vmatprep.subr.mxu0 0.0
    %888 = vmatpush1.msra.mxu0 0.0
    %889 = vmatprep.subr.mxu0 0.0
    %890 = vmatpush1.msra.mxu0 0.0
    %891 = vmatprep.subr.mxu0 0.0
    %892 = vmatpush1.msra.mxu0 0.0
    %893 = vmatprep.subr.mxu0 0.0
    %894 = vmatpush1.msra.mxu0 0.0
    %895 = vmatprep.subr.mxu0 0.0
    %896 = vmatpush1.msra.mxu0 0.0
    %897 = vmatprep.subr.mxu0 0.0
    %898 = vmatpush1.msra.mxu0 0.0
    %899 = vmatprep.subr.mxu0 0.0
    %900 = vmatpush1.msra.mxu0 0.0
    %901 = vmatprep.subr.mxu0 0.0
    %902 = vmatpush1.msra.mxu0 0.0
    %903 = vmatprep.subr.mxu0 0.0
    %904 = vmatpush1.msra.mxu0 0.0
    %905 = vmatprep.subr.mxu0 0.0
    %906 = vmatpush1.msra.mxu0 0.0
    %907 = vmatprep.subr.mxu0 0.0
    %908 = vmatpush1.msra.mxu0 0.0
    %909 = vmatprep.subr.mxu0 0.0
    %910 = vmatpush1.msra.mxu0 0.0
    %911 = vmatprep.subr.mxu0 0.0
    %912 = vmatpush1.msra.mxu0 %v853
    %913 = vmatprep.subr.mxu0 0.0
    %914 = vmatpush1.msra.mxu0 %v852
    %915 = vmatprep.subr.mxu0 0.0
    %916 = vmatpush1.msra.mxu0 %v851
    %917 = vmatprep.subr.mxu0 0.0
    %918 = vmatpush1.msra.mxu0 %v850
    %919 = vmatprep.subr.mxu0 0.0
    %920 = vmatpush2.msra.mxu0 0.0
    %921 = vmatprep.subr.mxu0 0.0
    %922 = vmatpush2.msra.mxu0 0.0
    %923 = vmatprep.subr.mxu0 0.0
    %924 = vmatpush2.msra.mxu0 0.0
    %925 = vmatprep.subr.mxu0 0.0
    %926 = vmatpush2.msra.mxu0 0.0
    %927 = vmatprep.subr.mxu0 0.0
    %928 = vmatpush2.msra.mxu0 0.0
    %929 = vmatprep.subr.mxu0 0.0
    %930 = vmatpush2.msra.mxu0 0.0
    %931 = vmatprep.subr.mxu0 0.0
    %932 = vmatpush2.msra.mxu0 0.0
    %933 = vmatprep.subr.mxu0 0.0
    %934 = vmatpush2.msra.mxu0 0.0
    %935 = vmatprep.subr.mxu0 0.0
    %936 = vmatpush2.msra.mxu0 0.0
    %937 = vmatprep.subr.mxu0 0.0
    %938 = vmatpush2.msra.mxu0 0.0
    %939 = vmatprep.subr.mxu0 0.0
    %940 = vmatpush2.msra.mxu0 0.0
    %941 = vmatprep.subr.mxu0 0.0
    %942 = vmatpush2.msra.mxu0 0.0
    %943 = vmatprep.subr.mxu0 0.0
    %944 = vmatpush2.msra.mxu0 0.0
    %945 = vmatprep.subr.mxu0 0.0
    %946 = vmatpush2.msra.mxu0 0.0
    %947 = vmatprep.subr.mxu0 0.0
    %948 = vmatpush2.msra.mxu0 0.0
    %949 = vmatprep.subr.mxu0 0.0
    %950 = vmatpush2.msra.mxu0 0.0
    %951 = vmatprep.mubr.f32.mxu0 0.0
    %952 = vmatmul.mubr.f32.gmra.mxu0 %v864
    %v953 = vpop.f32.mrf.mxu0
    %v954 = vadd.f32 0.0, %v953
    %v955 = vpop.f32.mrf.mxu0
    %956 = vmatprep.mubr.f32.mxu0 0.0
    %957 = vmatmul.mubr.f32.gmra.mxu0 %v867
    %v958 = vpop.f32.mrf.mxu0
    %v959 = vadd.f32 0.0, %v958
    %v960 = vpop.f32.mrf.mxu0
    %961 = vmatprep.mubr.f32.mxu0 0.0
    %962 = vmatmul.mubr.f32.gmra.mxu0 %v870
    %v963 = vpop.f32.mrf.mxu0
    %v964 = vadd.f32 0.0, %v963
    %v965 = vpop.f32.mrf.mxu0
    %966 = vmatprep.mubr.f32.mxu0 0.0
    %967 = vmatmul.mubr.f32.gmra.mxu0 %v873
    %v968 = vpop.f32.mrf.mxu0
    %v969 = vadd.f32 0.0, %v968
    %v970 = vpop.f32.mrf.mxu0
    %971 = vmatprep.mubr.f32.mxu0 0.0
    %972 = vmatmul.mubr.f32.gmra.mxu0 %v876
    %v973 = vpop.f32.mrf.mxu0
    %v974 = vadd.f32 0.0, %v973
    %v975 = vpop.f32.mrf.mxu0
    %976 = vmatprep.mubr.f32.mxu0 0.0
    %977 = vmatmul.mubr.f32.gmra.mxu0 %v879
    %v978 = vpop.f32.mrf.mxu0
    %v979 = vadd.f32 0.0, %v978
    %v980 = vpop.f32.mrf.mxu0
    %981 = vmatprep.mubr.f32.mxu0 0.0
    %982 = vmatmul.mubr.f32.gmra.mxu0 %v882
    %v983 = vpop.f32.mrf.mxu0
    %v984 = vadd.f32 0.0, %v983
    %v985 = vpop.f32.mrf.mxu0
    %986 = vmatprep.mubr.f32.mxu0 0.0
    %987 = vmatmul.mubr.f32.gmra.mxu0 %v885
    %v988 = vpop.f32.mrf.mxu0
    %v989 = vadd.f32 0.0, %v988
    %v990 = vpop.f32.mrf.mxu0
    %991 = vdwg.mxu0
    %993 = vset.pattern.permute.xlu0 0
    %994 = vperm.xlu0 %993, %v49
    %v995 = vpop.permute.xlu0 %994
    %998 = vset.pattern.permute.xlu0 0
    %999 = vperm.xlu0 %998, %v50
    %v1000 = vpop.permute.xlu0 %999
    %1003 = vset.pattern.permute.xlu0 0
    %1004 = vperm.xlu0 %1003, %v51
    %v1005 = vpop.permute.xlu0 %1004
    %1008 = vset.pattern.permute.xlu0 0
    %1009 = vperm.xlu0 %1008, %v52
    %v1010 = vpop.permute.xlu0 %1009
    %1013 = vset.pattern.permute.xlu0 0
    %1014 = vperm.xlu0 %1013, %v53
    %v1015 = vpop.permute.xlu0 %1014
    %1018 = vset.pattern.permute.xlu0 0
    %1019 = vperm.xlu0 %1018, %v54
    %v1020 = vpop.permute.xlu0 %1019
    %1023 = vset.pattern.permute.xlu0 0
    %1024 = vperm.xlu0 %1023, %v55
    %v1025 = vpop.permute.xlu0 %1024
    %1028 = vset.pattern.permute.xlu0 0
    %1029 = vperm.xlu0 %1028, %v56
    %v1030 = vpop.permute.xlu0 %1029
    %v1032 = vsub.f32 %v954, %v995
    %v1033 = vsub.f32 %v959, %v1000
    %v1034 = vsub.f32 %v964, %v1005
    %v1035 = vsub.f32 %v969, %v1010
    %v1036 = vsub.f32 %v974, %v1015
    %v1037 = vsub.f32 %v979, %v1020
    %v1038 = vsub.f32 %v984, %v1025
    %v1039 = vsub.f32 %v989, %v1030
    %v1040 = vld [vmem:[%s6] sm:$0xf]
    %v1043 = vunpack.c.l.s4 1983009808
    %v1044 = vunpack.c.0.s8 %v1043
    %v1045 = vlaneseq
    %v1046 = vshrl.u32 %v1045, 7
    %v1047 = vsub.s32 %v1044, %v1046
    %v1048 = vrot.slane %v1040, %v1047
    %v1049 = vcombine.high %v1048, %v1048
    %vm1050 = vcmask 15360
    %v1052 = vsel %vm1050, %v1032, 0
    %v1055 = vsel %vm1050, %v1033, 0
    %v1058 = vsel %vm1050, %v1034, 0
    %v1061 = vsel %vm1050, %v1035, 0
    %v1064 = vsel %vm1050, %v1036, 0
    %v1067 = vsel %vm1050, %v1037, 0
    %v1070 = vsel %vm1050, %v1038, 0
    %v1073 = vsel %vm1050, %v1039, 0
    %vm1075 = vcmask 1041408
    %v1076 = vsel %vm1075, %v1048, 0
    %v1078 = vsel %vm1075, %v1049, 0
    %1080 = vmatprep.subr.mxu0 0.0
    %1081 = vmatpush1.msra.mxu0 0.0
    %1082 = vmatprep.subr.mxu0 0.0
    %1083 = vmatpush1.msra.mxu0 0.0
    %1084 = vmatprep.subr.mxu0 0.0
    %1085 = vmatpush1.msra.mxu0 0.0
    %1086 = vmatprep.subr.mxu0 0.0
    %1087 = vmatpush1.msra.mxu0 0.0
    %1088 = vmatprep.subr.mxu0 0.0
    %1089 = vmatpush1.msra.mxu0 0.0
    %1090 = vmatprep.subr.mxu0 0.0
    %1091 = vmatpush1.msra.mxu0 0.0
    %1092 = vmatprep.subr.mxu0 0.0
    %1093 = vmatpush1.msra.mxu0 0.0
    %1094 = vmatprep.subr.mxu0 0.0
    %1095 = vmatpush1.msra.mxu0 0.0
    %1096 = vmatprep.subr.mxu0 0.0
    %1097 = vmatpush1.msra.mxu0 0.0
    %1098 = vmatprep.subr.mxu0 0.0
    %1099 = vmatpush1.msra.mxu0 0.0
    %1100 = vmatprep.subr.mxu0 0.0
    %1101 = vmatpush1.msra.mxu0 0.0
    %1102 = vmatprep.subr.mxu0 0.0
    %1103 = vmatpush1.msra.mxu0 0.0
    %1104 = vmatprep.subr.mxu0 0.0
    %1105 = vmatpush1.msra.mxu0 0.0
    %1106 = vmatprep.subr.mxu0 0.0
    %1107 = vmatpush1.msra.mxu0 0.0
    %1108 = vmatprep.subr.mxu0 0.0
    %1109 = vmatpush1.msra.mxu0 0.0
    %1110 = vmatprep.subr.mxu0 %v1078
    %1111 = vmatpush1.msra.mxu0 %v1076
    %1112 = vmatprep.subr.mxu0 0.0
    %1113 = vmatpush2.msra.mxu0 0.0
    %1114 = vmatprep.subr.mxu0 0.0
    %1115 = vmatpush2.msra.mxu0 0.0
    %1116 = vmatprep.subr.mxu0 0.0
    %1117 = vmatpush2.msra.mxu0 0.0
    %1118 = vmatprep.subr.mxu0 0.0
    %1119 = vmatpush2.msra.mxu0 0.0
    %1120 = vmatprep.subr.mxu0 0.0
    %1121 = vmatpush2.msra.mxu0 0.0
    %1122 = vmatprep.subr.mxu0 0.0
    %1123 = vmatpush2.msra.mxu0 0.0
    %1124 = vmatprep.subr.mxu0 0.0
    %1125 = vmatpush2.msra.mxu0 0.0
    %1126 = vmatprep.subr.mxu0 0.0
    %1127 = vmatpush2.msra.mxu0 0.0
    %1128 = vmatprep.subr.mxu0 0.0
    %1129 = vmatpush2.msra.mxu0 0.0
    %1130 = vmatprep.subr.mxu0 0.0
    %1131 = vmatpush2.msra.mxu0 0.0
    %1132 = vmatprep.subr.mxu0 0.0
    %1133 = vmatpush2.msra.mxu0 0.0
    %1134 = vmatprep.subr.mxu0 0.0
    %1135 = vmatpush2.msra.mxu0 0.0
    %1136 = vmatprep.subr.mxu0 0.0
    %1137 = vmatpush2.msra.mxu0 0.0
    %1138 = vmatprep.subr.mxu0 0.0
    %1139 = vmatpush2.msra.mxu0 0.0
    %1140 = vmatprep.subr.mxu0 0.0
    %1141 = vmatpush2.msra.mxu0 0.0
    %1142 = vmatprep.subr.mxu0 0.0
    %1143 = vmatpush2.msra.mxu0 0.0
    %1144 = vmatprep.mubr.f32.mxu0 0.0
    %1145 = vmatmul.mubr.f32.gmra.mxu0 %v1052
    %v1146 = vpop.f32.mrf.mxu0
    %v1147 = vadd.f32 0.0, %v1146
    %v1148 = vpop.f32.mrf.mxu0
    %v1149 = vadd.f32 0.0, %v1148
    %1150 = vmatprep.mubr.f32.mxu0 0.0
    %1151 = vmatmul.mubr.f32.gmra.mxu0 %v1055
    %v1152 = vpop.f32.mrf.mxu0
    %v1153 = vadd.f32 0.0, %v1152
    %v1154 = vpop.f32.mrf.mxu0
    %v1155 = vadd.f32 0.0, %v1154
    %1156 = vmatprep.mubr.f32.mxu0 0.0
    %1157 = vmatmul.mubr.f32.gmra.mxu0 %v1058
    %v1158 = vpop.f32.mrf.mxu0
    %v1159 = vadd.f32 0.0, %v1158
    %v1160 = vpop.f32.mrf.mxu0
    %v1161 = vadd.f32 0.0, %v1160
    %1162 = vmatprep.mubr.f32.mxu0 0.0
    %1163 = vmatmul.mubr.f32.gmra.mxu0 %v1061
    %v1164 = vpop.f32.mrf.mxu0
    %v1165 = vadd.f32 0.0, %v1164
    %v1166 = vpop.f32.mrf.mxu0
    %v1167 = vadd.f32 0.0, %v1166
    %1168 = vmatprep.mubr.f32.mxu0 0.0
    %1169 = vmatmul.mubr.f32.gmra.mxu0 %v1064
    %v1170 = vpop.f32.mrf.mxu0
    %v1171 = vadd.f32 0.0, %v1170
    %v1172 = vpop.f32.mrf.mxu0
    %v1173 = vadd.f32 0.0, %v1172
    %1174 = vmatprep.mubr.f32.mxu0 0.0
    %1175 = vmatmul.mubr.f32.gmra.mxu0 %v1067
    %v1176 = vpop.f32.mrf.mxu0
    %v1177 = vadd.f32 0.0, %v1176
    %v1178 = vpop.f32.mrf.mxu0
    %v1179 = vadd.f32 0.0, %v1178
    %1180 = vmatprep.mubr.f32.mxu0 0.0
    %1181 = vmatmul.mubr.f32.gmra.mxu0 %v1070
    %v1182 = vpop.f32.mrf.mxu0
    %v1183 = vadd.f32 0.0, %v1182
    %v1184 = vpop.f32.mrf.mxu0
    %v1185 = vadd.f32 0.0, %v1184
    %1186 = vmatprep.mubr.f32.mxu0 0.0
    %1187 = vmatmul.mubr.f32.gmra.mxu0 %v1073
    %v1188 = vpop.f32.mrf.mxu0
    %v1189 = vadd.f32 0.0, %v1188
    %v1190 = vpop.f32.mrf.mxu0
    %v1191 = vadd.f32 0.0, %v1190
    %1192 = vdwg.mxu0
    %v1193 = vsub.f32 %v548, %v1147
    %v1194 = vsub.f32 %v549, %v1149
    %v1195 = vsub.f32 %v550, %v1153
    %v1196 = vsub.f32 %v551, %v1155
    %v1197 = vsub.f32 %v552, %v1159
    %v1198 = vsub.f32 %v553, %v1161
    %v1199 = vsub.f32 %v554, %v1165
    %v1200 = vsub.f32 %v555, %v1167
    %v1201 = vsub.f32 %v556, %v1171
    %v1202 = vsub.f32 %v557, %v1173
    %v1203 = vsub.f32 %v558, %v1177
    %v1204 = vsub.f32 %v559, %v1179
    %v1205 = vsub.f32 %v560, %v1183
    %v1206 = vsub.f32 %v561, %v1185
    %v1207 = vsub.f32 %v562, %v1189
    %v1208 = vsub.f32 %v563, %v1191
    %v1209 = vmul.f32 %v1193, %v1193
    %v1210 = vmul.f32 %v1194, %v1194
    %v1211 = vmul.f32 %v1195, %v1195
    %v1212 = vmul.f32 %v1196, %v1196
    %v1213 = vmul.f32 %v1197, %v1197
    %v1214 = vmul.f32 %v1198, %v1198
    %v1215 = vmul.f32 %v1199, %v1199
    %v1216 = vmul.f32 %v1200, %v1200
    %v1217 = vmul.f32 %v1201, %v1201
    %v1218 = vmul.f32 %v1202, %v1202
    %v1219 = vmul.f32 %v1203, %v1203
    %v1220 = vmul.f32 %v1204, %v1204
    %v1221 = vmul.f32 %v1205, %v1205
    %v1222 = vmul.f32 %v1206, %v1206
    %v1223 = vmul.f32 %v1207, %v1207
    %v1224 = vmul.f32 %v1208, %v1208
    %1225 = vmatprep.subr.mxu0 0.0
    %1226 = vmatpush1.msra.mxu0 %v579
    %1227 = vmatprep.subr.mxu0 0.0
    %1228 = vmatpush1.msra.mxu0 %v578
    %1229 = vmatprep.subr.mxu0 0.0
    %1230 = vmatpush1.msra.mxu0 %v577
    %1231 = vmatprep.subr.mxu0 0.0
    %1232 = vmatpush1.msra.mxu0 %v576
    %1233 = vmatprep.subr.mxu0 0.0
    %1234 = vmatpush1.msra.mxu0 %v575
    %1235 = vmatprep.subr.mxu0 0.0
    %1236 = vmatpush1.msra.mxu0 %v574
    %1237 = vmatprep.subr.mxu0 0.0
    %1238 = vmatpush1.msra.mxu0 %v573
    %1239 = vmatprep.subr.mxu0 0.0
    %1240 = vmatpush1.msra.mxu0 %v572
    %1241 = vmatprep.subr.mxu0 0.0
    %1242 = vmatpush1.msra.mxu0 %v571
    %1243 = vmatprep.subr.mxu0 0.0
    %1244 = vmatpush1.msra.mxu0 %v570
    %1245 = vmatprep.subr.mxu0 0.0
    %1246 = vmatpush1.msra.mxu0 %v569
    %1247 = vmatprep.subr.mxu0 0.0
    %1248 = vmatpush1.msra.mxu0 %v568
    %1249 = vmatprep.subr.mxu0 0.0
    %1250 = vmatpush1.msra.mxu0 %v567
    %1251 = vmatprep.subr.mxu0 0.0
    %1252 = vmatpush1.msra.mxu0 %v566
    %1253 = vmatprep.subr.mxu0 0.0
    %1254 = vmatpush1.msra.mxu0 %v565
    %1255 = vmatprep.subr.mxu0 0.0
    %1256 = vmatpush1.msra.mxu0 %v564
    %1257 = vmatprep.subr.mxu0 0.0
    %1258 = vmatpush2.msra.mxu0 %v595
    %1259 = vmatprep.subr.mxu0 0.0
    %1260 = vmatpush2.msra.mxu0 %v594
    %1261 = vmatprep.subr.mxu0 0.0
    %1262 = vmatpush2.msra.mxu0 %v593
    %1263 = vmatprep.subr.mxu0 0.0
    %1264 = vmatpush2.msra.mxu0 %v592
    %1265 = vmatprep.subr.mxu0 0.0
    %1266 = vmatpush2.msra.mxu0 %v591
    %1267 = vmatprep.subr.mxu0 0.0
    %1268 = vmatpush2.msra.mxu0 %v590
    %1269 = vmatprep.subr.mxu0 0.0
    %1270 = vmatpush2.msra.mxu0 %v589
    %1271 = vmatprep.subr.mxu0 0.0
    %1272 = vmatpush2.msra.mxu0 %v588
    %1273 = vmatprep.subr.mxu0 0.0
    %1274 = vmatpush2.msra.mxu0 %v587
    %1275 = vmatprep.subr.mxu0 0.0
    %1276 = vmatpush2.msra.mxu0 %v586
    %1277 = vmatprep.subr.mxu0 0.0
    %1278 = vmatpush2.msra.mxu0 %v585
    %1279 = vmatprep.subr.mxu0 0.0
    %1280 = vmatpush2.msra.mxu0 %v584
    %1281 = vmatprep.subr.mxu0 0.0
    %1282 = vmatpush2.msra.mxu0 %v583
    %1283 = vmatprep.subr.mxu0 0.0
    %1284 = vmatpush2.msra.mxu0 %v582
    %1285 = vmatprep.subr.mxu0 0.0
    %1286 = vmatpush2.msra.mxu0 %v581
    %1287 = vmatprep.subr.mxu0 0.0
    %1288 = vmatpush2.msra.mxu0 %v580
    %1289 = vmatprep.mubr.f32.mxu0 %v1210
    %1290 = vmatmul.mubr.f32.gmra.mxu0 %v1209
    %v1291 = vpop.f32.mrf.mxu0
    %v1292 = vadd.f32 0.0, %v1291
    %v1293 = vpop.f32.mrf.mxu0
    %1294 = vmatprep.mubr.f32.mxu0 %v1212
    %1295 = vmatmul.mubr.f32.gmra.mxu0 %v1211
    %v1296 = vpop.f32.mrf.mxu0
    %v1297 = vadd.f32 0.0, %v1296
    %v1298 = vpop.f32.mrf.mxu0
    %1299 = vmatprep.mubr.f32.mxu0 %v1214
    %1300 = vmatmul.mubr.f32.gmra.mxu0 %v1213
    %v1301 = vpop.f32.mrf.mxu0
    %v1302 = vadd.f32 0.0, %v1301
    %v1303 = vpop.f32.mrf.mxu0
    %1304 = vmatprep.mubr.f32.mxu0 %v1216
    %1305 = vmatmul.mubr.f32.gmra.mxu0 %v1215
    %v1306 = vpop.f32.mrf.mxu0
    %v1307 = vadd.f32 0.0, %v1306
    %v1308 = vpop.f32.mrf.mxu0
    %1309 = vmatprep.mubr.f32.mxu0 %v1218
    %1310 = vmatmul.mubr.f32.gmra.mxu0 %v1217
    %v1311 = vpop.f32.mrf.mxu0
    %v1312 = vadd.f32 0.0, %v1311
    %v1313 = vpop.f32.mrf.mxu0
    %1314 = vmatprep.mubr.f32.mxu0 %v1220
    %1315 = vmatmul.mubr.f32.gmra.mxu0 %v1219
    %v1316 = vpop.f32.mrf.mxu0
    %v1317 = vadd.f32 0.0, %v1316
    %v1318 = vpop.f32.mrf.mxu0
    %1319 = vmatprep.mubr.f32.mxu0 %v1222
    %1320 = vmatmul.mubr.f32.gmra.mxu0 %v1221
    %v1321 = vpop.f32.mrf.mxu0
    %v1322 = vadd.f32 0.0, %v1321
    %v1323 = vpop.f32.mrf.mxu0
    %1324 = vmatprep.mubr.f32.mxu0 %v1224
    %1325 = vmatmul.mubr.f32.gmra.mxu0 %v1223
    %v1326 = vpop.f32.mrf.mxu0
    %v1327 = vadd.f32 0.0, %v1326
    %v1328 = vpop.f32.mrf.mxu0
    %1329 = vdwg.mxu0
    %1330 = vmatprep.subr.mxu0 0.0
    %1331 = vmatpush1.msra.mxu0 0.0
    %1332 = vmatprep.subr.mxu0 0.0
    %1333 = vmatpush1.msra.mxu0 0.0
    %1334 = vmatprep.subr.mxu0 0.0
    %1335 = vmatpush1.msra.mxu0 0.0
    %1336 = vmatprep.subr.mxu0 0.0
    %1337 = vmatpush1.msra.mxu0 0.0
    %1338 = vmatprep.subr.mxu0 0.0
    %1339 = vmatpush1.msra.mxu0 0.0
    %1340 = vmatprep.subr.mxu0 0.0
    %1341 = vmatpush1.msra.mxu0 0.0
    %1342 = vmatprep.subr.mxu0 0.0
    %1343 = vmatpush1.msra.mxu0 0.0
    %1344 = vmatprep.subr.mxu0 0.0
    %1345 = vmatpush1.msra.mxu0 0.0
    %1346 = vmatprep.subr.mxu0 0.0
    %1347 = vmatpush1.msra.mxu0 %v1327
    %1348 = vmatprep.subr.mxu0 0.0
    %1349 = vmatpush1.msra.mxu0 %v1322
    %1350 = vmatprep.subr.mxu0 0.0
    %1351 = vmatpush1.msra.mxu0 %v1317
    %1352 = vmatprep.subr.mxu0 0.0
    %1353 = vmatpush1.msra.mxu0 %v1312
    %1354 = vmatprep.subr.mxu0 0.0
    %1355 = vmatpush1.msra.mxu0 %v1307
    %1356 = vmatprep.subr.mxu0 0.0
    %1357 = vmatpush1.msra.mxu0 %v1302
    %1358 = vmatprep.subr.mxu0 0.0
    %1359 = vmatpush1.msra.mxu0 %v1297
    %1360 = vmatprep.subr.mxu0 0.0
    %1361 = vmatpush1.msra.mxu0 %v1292
    %1362 = vmatprep.subr.mxu0 0.0
    %1363 = vmatpush2.msra.mxu0 0.0
    %1364 = vmatprep.subr.mxu0 0.0
    %1365 = vmatpush2.msra.mxu0 0.0
    %1366 = vmatprep.subr.mxu0 0.0
    %1367 = vmatpush2.msra.mxu0 0.0
    %1368 = vmatprep.subr.mxu0 0.0
    %1369 = vmatpush2.msra.mxu0 0.0
    %1370 = vmatprep.subr.mxu0 0.0
    %1371 = vmatpush2.msra.mxu0 0.0
    %1372 = vmatprep.subr.mxu0 0.0
    %1373 = vmatpush2.msra.mxu0 0.0
    %1374 = vmatprep.subr.mxu0 0.0
    %1375 = vmatpush2.msra.mxu0 0.0
    %1376 = vmatprep.subr.mxu0 0.0
    %1377 = vmatpush2.msra.mxu0 0.0
    %1378 = vmatprep.subr.mxu0 0.0
    %1379 = vmatpush2.msra.mxu0 0.0
    %1380 = vmatprep.subr.mxu0 0.0
    %1381 = vmatpush2.msra.mxu0 0.0
    %1382 = vmatprep.subr.mxu0 0.0
    %1383 = vmatpush2.msra.mxu0 0.0
    %1384 = vmatprep.subr.mxu0 0.0
    %1385 = vmatpush2.msra.mxu0 0.0
    %1386 = vmatprep.subr.mxu0 0.0
    %1387 = vmatpush2.msra.mxu0 0.0
    %1388 = vmatprep.subr.mxu0 0.0
    %1389 = vmatpush2.msra.mxu0 0.0
    %1390 = vmatprep.subr.mxu0 0.0
    %1391 = vmatpush2.msra.mxu0 0.0
    %1392 = vmatprep.subr.mxu0 0.0
    %1393 = vmatpush2.msra.mxu0 0.0
    %1394 = vmatprep.mubr.f32.mxu0 0.0
    %1395 = vmatmul.mubr.f32.gmra.mxu0 %v754
    %v1396 = vpop.f32.mrf.mxu0
    %v1397 = vadd.f32 0.0, %v1396
    %v1398 = vpop.f32.mrf.mxu0
    %1399 = vmatprep.mubr.f32.mxu0 0.0
    %1400 = vmatmul.mubr.f32.gmra.mxu0 %v757
    %v1401 = vpop.f32.mrf.mxu0
    %v1402 = vadd.f32 0.0, %v1401
    %v1403 = vpop.f32.mrf.mxu0
    %1404 = vmatprep.mubr.f32.mxu0 0.0
    %1405 = vmatmul.mubr.f32.gmra.mxu0 %v760
    %v1406 = vpop.f32.mrf.mxu0
    %v1407 = vadd.f32 0.0, %v1406
    %v1408 = vpop.f32.mrf.mxu0
    %1409 = vmatprep.mubr.f32.mxu0 0.0
    %1410 = vmatmul.mubr.f32.gmra.mxu0 %v763
    %v1411 = vpop.f32.mrf.mxu0
    %v1412 = vadd.f32 0.0, %v1411
    %v1413 = vpop.f32.mrf.mxu0
    %1414 = vdwg.mxu0
    %v1415 = vmul.f32 %v1397, 0.00390625
    %v1416 = vmul.f32 %v1402, 0.00390625
    %v1417 = vmul.f32 %v1407, 0.00390625
    %v1418 = vmul.f32 %v1412, 0.00390625
    %v1419 = vadd.f32 %v1415, 1e-05
    %v1420 = vadd.f32 %v1416, 1e-05
    %v1421 = vadd.f32 %v1417, 1e-05
    %v1422 = vadd.f32 %v1418, 1e-05
    %v1423 = vrsqrt.pop %v1419
    %v1424 = vrsqrt.pop %v1420
    %v1425 = vrsqrt.pop %v1421
    %v1426 = vrsqrt.pop %v1422
    %1427 = vmatprep.subr.mxu0 0.0
    %1428 = vmatpush1.msra.mxu0 0.0
    %1429 = vmatprep.subr.mxu0 0.0
    %1430 = vmatpush1.msra.mxu0 0.0
    %1431 = vmatprep.subr.mxu0 0.0
    %1432 = vmatpush1.msra.mxu0 0.0
    %1433 = vmatprep.subr.mxu0 0.0
    %1434 = vmatpush1.msra.mxu0 0.0
    %1435 = vmatprep.subr.mxu0 0.0
    %1436 = vmatpush1.msra.mxu0 0.0
    %1437 = vmatprep.subr.mxu0 0.0
    %1438 = vmatpush1.msra.mxu0 0.0
    %1439 = vmatprep.subr.mxu0 0.0
    %1440 = vmatpush1.msra.mxu0 0.0
    %1441 = vmatprep.subr.mxu0 0.0
    %1442 = vmatpush1.msra.mxu0 0.0
    %1443 = vmatprep.subr.mxu0 0.0
    %1444 = vmatpush1.msra.mxu0 0.0
    %1445 = vmatprep.subr.mxu0 0.0
    %1446 = vmatpush1.msra.mxu0 0.0
    %1447 = vmatprep.subr.mxu0 0.0
    %1448 = vmatpush1.msra.mxu0 0.0
    %1449 = vmatprep.subr.mxu0 0.0
    %1450 = vmatpush1.msra.mxu0 0.0
    %1451 = vmatprep.subr.mxu0 0.0
    %1452 = vmatpush1.msra.mxu0 %v1426
    %1453 = vmatprep.subr.mxu0 0.0
    %1454 = vmatpush1.msra.mxu0 %v1425
    %1455 = vmatprep.subr.mxu0 0.0
    %1456 = vmatpush1.msra.mxu0 %v1424
    %1457 = vmatprep.subr.mxu0 0.0
    %1458 = vmatpush1.msra.mxu0 %v1423
    %1459 = vmatprep.subr.mxu0 0.0
    %1460 = vmatpush2.msra.mxu0 0.0
    %1461 = vmatprep.subr.mxu0 0.0
    %1462 = vmatpush2.msra.mxu0 0.0
    %1463 = vmatprep.subr.mxu0 0.0
    %1464 = vmatpush2.msra.mxu0 0.0
    %1465 = vmatprep.subr.mxu0 0.0
    %1466 = vmatpush2.msra.mxu0 0.0
    %1467 = vmatprep.subr.mxu0 0.0
    %1468 = vmatpush2.msra.mxu0 0.0
    %1469 = vmatprep.subr.mxu0 0.0
    %1470 = vmatpush2.msra.mxu0 0.0
    %1471 = vmatprep.subr.mxu0 0.0
    %1472 = vmatpush2.msra.mxu0 0.0
    %1473 = vmatprep.subr.mxu0 0.0
    %1474 = vmatpush2.msra.mxu0 0.0
    %1475 = vmatprep.subr.mxu0 0.0
    %1476 = vmatpush2.msra.mxu0 0.0
    %1477 = vmatprep.subr.mxu0 0.0
    %1478 = vmatpush2.msra.mxu0 0.0
    %1479 = vmatprep.subr.mxu0 0.0
    %1480 = vmatpush2.msra.mxu0 0.0
    %1481 = vmatprep.subr.mxu0 0.0
    %1482 = vmatpush2.msra.mxu0 0.0
    %1483 = vmatprep.subr.mxu0 0.0
    %1484 = vmatpush2.msra.mxu0 0.0
    %1485 = vmatprep.subr.mxu0 0.0
    %1486 = vmatpush2.msra.mxu0 0.0
    %1487 = vmatprep.subr.mxu0 0.0
    %1488 = vmatpush2.msra.mxu0 0.0
    %1489 = vmatprep.subr.mxu0 0.0
    %1490 = vmatpush2.msra.mxu0 0.0
    %1491 = vmatprep.mubr.f32.mxu0 0.0
    %1492 = vmatmul.mubr.f32.gmra.mxu0 %v864
    %v1493 = vpop.f32.mrf.mxu0
    %v1494 = vadd.f32 0.0, %v1493
    %v1495 = vpop.f32.mrf.mxu0
    %1496 = vmatprep.mubr.f32.mxu0 0.0
    %1497 = vmatmul.mubr.f32.gmra.mxu0 %v867
    %v1498 = vpop.f32.mrf.mxu0
    %v1499 = vadd.f32 0.0, %v1498
    %v1500 = vpop.f32.mrf.mxu0
    %1501 = vmatprep.mubr.f32.mxu0 0.0
    %1502 = vmatmul.mubr.f32.gmra.mxu0 %v870
    %v1503 = vpop.f32.mrf.mxu0
    %v1504 = vadd.f32 0.0, %v1503
    %v1505 = vpop.f32.mrf.mxu0
    %1506 = vmatprep.mubr.f32.mxu0 0.0
    %1507 = vmatmul.mubr.f32.gmra.mxu0 %v873
    %v1508 = vpop.f32.mrf.mxu0
    %v1509 = vadd.f32 0.0, %v1508
    %v1510 = vpop.f32.mrf.mxu0
    %1511 = vmatprep.mubr.f32.mxu0 0.0
    %1512 = vmatmul.mubr.f32.gmra.mxu0 %v876
    %v1513 = vpop.f32.mrf.mxu0
    %v1514 = vadd.f32 0.0, %v1513
    %v1515 = vpop.f32.mrf.mxu0
    %1516 = vmatprep.mubr.f32.mxu0 0.0
    %1517 = vmatmul.mubr.f32.gmra.mxu0 %v879
    %v1518 = vpop.f32.mrf.mxu0
    %v1519 = vadd.f32 0.0, %v1518
    %v1520 = vpop.f32.mrf.mxu0
    %1521 = vmatprep.mubr.f32.mxu0 0.0
    %1522 = vmatmul.mubr.f32.gmra.mxu0 %v882
    %v1523 = vpop.f32.mrf.mxu0
    %v1524 = vadd.f32 0.0, %v1523
    %v1525 = vpop.f32.mrf.mxu0
    %1526 = vmatprep.mubr.f32.mxu0 0.0
    %1527 = vmatmul.mubr.f32.gmra.mxu0 %v885
    %v1528 = vpop.f32.mrf.mxu0
    %v1529 = vadd.f32 0.0, %v1528
    %v1530 = vpop.f32.mrf.mxu0
    %1531 = vdwg.mxu0
    %1532 = vset.pattern.permute.xlu0 1
    %1533 = vperm.xlu0 %1532, %v49
    %v1534 = vpop.permute.xlu0 %1533
    %1536 = vset.pattern.permute.xlu0 1
    %1537 = vperm.xlu0 %1536, %v50
    %v1538 = vpop.permute.xlu0 %1537
    %1540 = vset.pattern.permute.xlu0 1
    %1541 = vperm.xlu0 %1540, %v51
    %v1542 = vpop.permute.xlu0 %1541
    %1544 = vset.pattern.permute.xlu0 1
    %1545 = vperm.xlu0 %1544, %v52
    %v1546 = vpop.permute.xlu0 %1545
    %1548 = vset.pattern.permute.xlu0 1
    %1549 = vperm.xlu0 %1548, %v53
    %v1550 = vpop.permute.xlu0 %1549
    %1552 = vset.pattern.permute.xlu0 1
    %1553 = vperm.xlu0 %1552, %v54
    %v1554 = vpop.permute.xlu0 %1553
    %1556 = vset.pattern.permute.xlu0 1
    %1557 = vperm.xlu0 %1556, %v55
    %v1558 = vpop.permute.xlu0 %1557
    %1560 = vset.pattern.permute.xlu0 1
    %1561 = vperm.xlu0 %1560, %v56
    %v1562 = vpop.permute.xlu0 %1561
    %v1564 = vmul.f32 %v1494, %v1534
    %v1565 = vmul.f32 %v1499, %v1538
    %v1566 = vmul.f32 %v1504, %v1542
    %v1567 = vmul.f32 %v1509, %v1546
    %v1568 = vmul.f32 %v1514, %v1550
    %v1569 = vmul.f32 %v1519, %v1554
    %v1570 = vmul.f32 %v1524, %v1558
    %v1571 = vmul.f32 %v1529, %v1562
    %v1573 = vsel %vm1050, %v1564, 0
    %v1576 = vsel %vm1050, %v1565, 0
    %v1579 = vsel %vm1050, %v1566, 0
    %v1582 = vsel %vm1050, %v1567, 0
    %v1585 = vsel %vm1050, %v1568, 0
    %v1588 = vsel %vm1050, %v1569, 0
    %v1591 = vsel %vm1050, %v1570, 0
    %v1594 = vsel %vm1050, %v1571, 0
    %1596 = vmatprep.subr.mxu0 0.0
    %1597 = vmatpush1.msra.mxu0 0.0
    %1598 = vmatprep.subr.mxu0 0.0
    %1599 = vmatpush1.msra.mxu0 0.0
    %1600 = vmatprep.subr.mxu0 0.0
    %1601 = vmatpush1.msra.mxu0 0.0
    %1602 = vmatprep.subr.mxu0 0.0
    %1603 = vmatpush1.msra.mxu0 0.0
    %1604 = vmatprep.subr.mxu0 0.0
    %1605 = vmatpush1.msra.mxu0 0.0
    %1606 = vmatprep.subr.mxu0 0.0
    %1607 = vmatpush1.msra.mxu0 0.0
    %1608 = vmatprep.subr.mxu0 0.0
    %1609 = vmatpush1.msra.mxu0 0.0
    %1610 = vmatprep.subr.mxu0 0.0
    %1611 = vmatpush1.msra.mxu0 0.0
    %1612 = vmatprep.subr.mxu0 0.0
    %1613 = vmatpush1.msra.mxu0 0.0
    %1614 = vmatprep.subr.mxu0 0.0
    %1615 = vmatpush1.msra.mxu0 0.0
    %1616 = vmatprep.subr.mxu0 0.0
    %1617 = vmatpush1.msra.mxu0 0.0
    %1618 = vmatprep.subr.mxu0 0.0
    %1619 = vmatpush1.msra.mxu0 0.0
    %1620 = vmatprep.subr.mxu0 0.0
    %1621 = vmatpush1.msra.mxu0 0.0
    %1622 = vmatprep.subr.mxu0 0.0
    %1623 = vmatpush1.msra.mxu0 0.0
    %1624 = vmatprep.subr.mxu0 0.0
    %1625 = vmatpush1.msra.mxu0 0.0
    %1626 = vmatprep.subr.mxu0 %v1078
    %1627 = vmatpush1.msra.mxu0 %v1076
    %1628 = vmatprep.subr.mxu0 0.0
    %1629 = vmatpush2.msra.mxu0 0.0
    %1630 = vmatprep.subr.mxu0 0.0
    %1631 = vmatpush2.msra.mxu0 0.0
    %1632 = vmatprep.subr.mxu0 0.0
    %1633 = vmatpush2.msra.mxu0 0.0
    %1634 = vmatprep.subr.mxu0 0.0
    %1635 = vmatpush2.msra.mxu0 0.0
    %1636 = vmatprep.subr.mxu0 0.0
    %1637 = vmatpush2.msra.mxu0 0.0
    %1638 = vmatprep.subr.mxu0 0.0
    %1639 = vmatpush2.msra.mxu0 0.0
    %1640 = vmatprep.subr.mxu0 0.0
    %1641 = vmatpush2.msra.mxu0 0.0
    %1642 = vmatprep.subr.mxu0 0.0
    %1643 = vmatpush2.msra.mxu0 0.0
    %1644 = vmatprep.subr.mxu0 0.0
    %1645 = vmatpush2.msra.mxu0 0.0
    %1646 = vmatprep.subr.mxu0 0.0
    %1647 = vmatpush2.msra.mxu0 0.0
    %1648 = vmatprep.subr.mxu0 0.0
    %1649 = vmatpush2.msra.mxu0 0.0
    %1650 = vmatprep.subr.mxu0 0.0
    %1651 = vmatpush2.msra.mxu0 0.0
    %1652 = vmatprep.subr.mxu0 0.0
    %1653 = vmatpush2.msra.mxu0 0.0
    %1654 = vmatprep.subr.mxu0 0.0
    %1655 = vmatpush2.msra.mxu0 0.0
    %1656 = vmatprep.subr.mxu0 0.0
    %1657 = vmatpush2.msra.mxu0 0.0
    %1658 = vmatprep.subr.mxu0 0.0
    %1659 = vmatpush2.msra.mxu0 0.0
    %1660 = vmatprep.mubr.f32.mxu0 0.0
    %1661 = vmatmul.mubr.f32.gmra.mxu0 %v1573
    %v1662 = vpop.f32.mrf.mxu0
    %v1663 = vadd.f32 0.0, %v1662
    %v1664 = vpop.f32.mrf.mxu0
    %v1665 = vadd.f32 0.0, %v1664
    %1666 = vmatprep.mubr.f32.mxu0 0.0
    %1667 = vmatmul.mubr.f32.gmra.mxu0 %v1576
    %v1668 = vpop.f32.mrf.mxu0
    %v1669 = vadd.f32 0.0, %v1668
    %v1670 = vpop.f32.mrf.mxu0
    %v1671 = vadd.f32 0.0, %v1670
    %1672 = vmatprep.mubr.f32.mxu0 0.0
    %1673 = vmatmul.mubr.f32.gmra.mxu0 %v1579
    %v1674 = vpop.f32.mrf.mxu0
    %v1675 = vadd.f32 0.0, %v1674
    %v1676 = vpop.f32.mrf.mxu0
    %v1677 = vadd.f32 0.0, %v1676
    %1678 = vmatprep.mubr.f32.mxu0 0.0
    %1679 = vmatmul.mubr.f32.gmra.mxu0 %v1582
    %v1680 = vpop.f32.mrf.mxu0
    %v1681 = vadd.f32 0.0, %v1680
    %v1682 = vpop.f32.mrf.mxu0
    %v1683 = vadd.f32 0.0, %v1682
    %1684 = vmatprep.mubr.f32.mxu0 0.0
    %1685 = vmatmul.mubr.f32.gmra.mxu0 %v1585
    %v1686 = vpop.f32.mrf.mxu0
    %v1687 = vadd.f32 0.0, %v1686
    %v1688 = vpop.f32.mrf.mxu0
    %v1689 = vadd.f32 0.0, %v1688
    %1690 = vmatprep.mubr.f32.mxu0 0.0
    %1691 = vmatmul.mubr.f32.gmra.mxu0 %v1588
    %v1692 = vpop.f32.mrf.mxu0
    %v1693 = vadd.f32 0.0, %v1692
    %v1694 = vpop.f32.mrf.mxu0
    %v1695 = vadd.f32 0.0, %v1694
    %1696 = vmatprep.mubr.f32.mxu0 0.0
    %1697 = vmatmul.mubr.f32.gmra.mxu0 %v1591
    %v1698 = vpop.f32.mrf.mxu0
    %v1699 = vadd.f32 0.0, %v1698
    %v1700 = vpop.f32.mrf.mxu0
    %v1701 = vadd.f32 0.0, %v1700
    %1702 = vmatprep.mubr.f32.mxu0 0.0
    %1703 = vmatmul.mubr.f32.gmra.mxu0 %v1594
    %v1704 = vpop.f32.mrf.mxu0
    %v1705 = vadd.f32 0.0, %v1704
    %v1706 = vpop.f32.mrf.mxu0
    %v1707 = vadd.f32 0.0, %v1706
    %1708 = vdwg.mxu0
    %v1709 = vmul.f32 %v1193, %v1663
    %v1710 = vmul.f32 %v1194, %v1665
    %v1711 = vmul.f32 %v1195, %v1669
    %v1712 = vmul.f32 %v1196, %v1671
    %v1713 = vmul.f32 %v1197, %v1675
    %v1714 = vmul.f32 %v1198, %v1677
    %v1715 = vmul.f32 %v1199, %v1681
    %v1716 = vmul.f32 %v1200, %v1683
    %v1717 = vmul.f32 %v1201, %v1687
    %v1718 = vmul.f32 %v1202, %v1689
    %v1719 = vmul.f32 %v1203, %v1693
    %v1720 = vmul.f32 %v1204, %v1695
    %v1721 = vmul.f32 %v1205, %v1699
    %v1722 = vmul.f32 %v1206, %v1701
    %v1723 = vmul.f32 %v1207, %v1705
    %v1724 = vmul.f32 %v1208, %v1707
    %1725 = vset.pattern.permute.xlu0 2
    %1726 = vperm.xlu0 %1725, %v49
    %v1727 = vpop.permute.xlu0 %1726
    %1729 = vset.pattern.permute.xlu0 2
    %1730 = vperm.xlu0 %1729, %v50
    %v1731 = vpop.permute.xlu0 %1730
    %1733 = vset.pattern.permute.xlu0 2
    %1734 = vperm.xlu0 %1733, %v51
    %v1735 = vpop.permute.xlu0 %1734
    %1737 = vset.pattern.permute.xlu0 2
    %1738 = vperm.xlu0 %1737, %v52
    %v1739 = vpop.permute.xlu0 %1738
    %1741 = vset.pattern.permute.xlu0 2
    %1742 = vperm.xlu0 %1741, %v53
    %v1743 = vpop.permute.xlu0 %1742
    %1745 = vset.pattern.permute.xlu0 2
    %1746 = vperm.xlu0 %1745, %v54
    %v1747 = vpop.permute.xlu0 %1746
    %1749 = vset.pattern.permute.xlu0 2
    %1750 = vperm.xlu0 %1749, %v55
    %v1751 = vpop.permute.xlu0 %1750
    %1753 = vset.pattern.permute.xlu0 2
    %1754 = vperm.xlu0 %1753, %v56
    %v1755 = vpop.permute.xlu0 %1754
    %v1757 = vadd.f32 %v1709, %v1727
    %v1758 = vadd.f32 %v1710, %v1727
    %v1759 = vadd.f32 %v1711, %v1731
    %v1760 = vadd.f32 %v1712, %v1731
    %v1761 = vadd.f32 %v1713, %v1735
    %v1762 = vadd.f32 %v1714, %v1735
    %v1763 = vadd.f32 %v1715, %v1739
    %v1764 = vadd.f32 %v1716, %v1739
    %v1765 = vadd.f32 %v1717, %v1743
    %v1766 = vadd.f32 %v1718, %v1743
    %v1767 = vadd.f32 %v1719, %v1747
    %v1768 = vadd.f32 %v1720, %v1747
    %v1769 = vadd.f32 %v1721, %v1751
    %v1770 = vadd.f32 %v1722, %v1751
    %v1771 = vadd.f32 %v1723, %v1755
    %v1772 = vadd.f32 %v1724, %v1755
    %v1773 = vmax.f32 %v1757, 0.0
    %v1774 = vmax.f32 %v1758, 0.0
    %v1775 = vmax.f32 %v1759, 0.0
    %v1776 = vmax.f32 %v1760, 0.0
    %v1777 = vmax.f32 %v1761, 0.0
    %v1778 = vmax.f32 %v1762, 0.0
    %v1779 = vmax.f32 %v1763, 0.0
    %v1780 = vmax.f32 %v1764, 0.0
    %v1781 = vmax.f32 %v1765, 0.0
    %v1782 = vmax.f32 %v1766, 0.0
    %v1783 = vmax.f32 %v1767, 0.0
    %v1784 = vmax.f32 %v1768, 0.0
    %v1785 = vmax.f32 %v1769, 0.0
    %v1786 = vmax.f32 %v1770, 0.0
    %v1787 = vmax.f32 %v1771, 0.0
    %v1788 = vmax.f32 %v1772, 0.0
    %v1789 = vld [vmem:[%s7] sm:$0xff]
    %v1790 = vld [vmem:[%s7 + $0x8] sm:$0xff]
    %v1791 = vld [vmem:[%s7 + $0x10] sm:$0xff]
    %v1793 = vsel %vm120, %v1789, 0
    %v1796 = vsel %vm120, %v1790, 0
    %v1799 = vsel %vm120, %v1791, 0
    %1801 = vmatprep.subr.mxu0 0.0
    %1802 = vmatpush1.msra.mxu0 0.0
    %1803 = vmatprep.subr.mxu0 0.0
    %1804 = vmatpush1.msra.mxu0 0.0
    %1805 = vmatprep.subr.mxu0 0.0
    %1806 = vmatpush1.msra.mxu0 0.0
    %1807 = vmatprep.subr.mxu0 0.0
    %1808 = vmatpush1.msra.mxu0 0.0
    %1809 = vmatprep.subr.mxu0 0.0
    %1810 = vmatpush1.msra.mxu0 0.0
    %1811 = vmatprep.subr.mxu0 0.0
    %1812 = vmatpush1.msra.mxu0 0.0
    %1813 = vmatprep.subr.mxu0 0.0
    %1814 = vmatpush1.msra.mxu0 0.0
    %1815 = vmatprep.subr.mxu0 0.0
    %1816 = vmatpush1.msra.mxu0 0.0
    %1817 = vmatprep.subr.mxu0 %v1788
    %1818 = vmatpush1.msra.mxu0 %v1787
    %1819 = vmatprep.subr.mxu0 %v1786
    %1820 = vmatpush1.msra.mxu0 %v1785
    %1821 = vmatprep.subr.mxu0 %v1784
    %1822 = vmatpush1.msra.mxu0 %v1783
    %1823 = vmatprep.subr.mxu0 %v1782
    %1824 = vmatpush1.msra.mxu0 %v1781
    %1825 = vmatprep.subr.mxu0 %v1780
    %1826 = vmatpush1.msra.mxu0 %v1779
    %1827 = vmatprep.subr.mxu0 %v1778
    %1828 = vmatpush1.msra.mxu0 %v1777
    %1829 = vmatprep.subr.mxu0 %v1776
    %1830 = vmatpush1.msra.mxu0 %v1775
    %1831 = vmatprep.subr.mxu0 %v1774
    %1832 = vmatpush1.msra.mxu0 %v1773
    %1833 = vmatprep.subr.mxu0 0.0
    %1834 = vmatpush2.msra.mxu0 0.0
    %1835 = vmatprep.subr.mxu0 0.0
    %1836 = vmatpush2.msra.mxu0 0.0
    %1837 = vmatprep.subr.mxu0 0.0
    %1838 = vmatpush2.msra.mxu0 0.0
    %1839 = vmatprep.subr.mxu0 0.0
    %1840 = vmatpush2.msra.mxu0 0.0
    %1841 = vmatprep.subr.mxu0 0.0
    %1842 = vmatpush2.msra.mxu0 0.0
    %1843 = vmatprep.subr.mxu0 0.0
    %1844 = vmatpush2.msra.mxu0 0.0
    %1845 = vmatprep.subr.mxu0 0.0
    %1846 = vmatpush2.msra.mxu0 0.0
    %1847 = vmatprep.subr.mxu0 0.0
    %1848 = vmatpush2.msra.mxu0 0.0
    %1849 = vmatprep.subr.mxu0 0.0
    %1850 = vmatpush2.msra.mxu0 0.0
    %1851 = vmatprep.subr.mxu0 0.0
    %1852 = vmatpush2.msra.mxu0 0.0
    %1853 = vmatprep.subr.mxu0 0.0
    %1854 = vmatpush2.msra.mxu0 0.0
    %1855 = vmatprep.subr.mxu0 0.0
    %1856 = vmatpush2.msra.mxu0 0.0
    %1857 = vmatprep.subr.mxu0 0.0
    %1858 = vmatpush2.msra.mxu0 0.0
    %1859 = vmatprep.subr.mxu0 0.0
    %1860 = vmatpush2.msra.mxu0 0.0
    %1861 = vmatprep.subr.mxu0 0.0
    %1862 = vmatpush2.msra.mxu0 0.0
    %1863 = vmatprep.subr.mxu0 0.0
    %1864 = vmatpush2.msra.mxu0 0.0
    %1865 = vmatprep.mubr.f32.mxu0 0.0
    %1866 = vmatmul.mubr.f32.gmra.mxu0 %v1793
    %v1867 = vpop.f32.mrf.mxu0
    %v1868 = vadd.f32 0.0, %v1867
    %v1869 = vpop.f32.mrf.mxu0
    %v1870 = vadd.f32 0.0, %v1869
    %1871 = vmatprep.mubr.f32.mxu0 0.0
    %1872 = vmatmul.mubr.f32.gmra.mxu0 %v1796
    %v1873 = vpop.f32.mrf.mxu0
    %v1874 = vadd.f32 0.0, %v1873
    %v1875 = vpop.f32.mrf.mxu0
    %v1876 = vadd.f32 0.0, %v1875
    %1877 = vmatprep.mubr.f32.mxu0 0.0
    %1878 = vmatmul.mubr.f32.gmra.mxu0 %v1799
    %v1879 = vpop.f32.mrf.mxu0
    %v1880 = vadd.f32 0.0, %v1879
    %v1881 = vpop.f32.mrf.mxu0
    %v1882 = vadd.f32 0.0, %v1881
    %1883 = vdwg.mxu0
    %1884 = vrot.lane.b32.xlu0 %v1868, 1
    %v1885 = vpop.permute.xlu0 %1884
    %1886 = vrot.lane.b32.xlu0 %v1870, 1
    %v1887 = vpop.permute.xlu0 %1886
    %v1888 = vsel %vm434, %v1885, %v1887
    %v1889 = vsel %vm434, %v1887, %v1885
    %v1890 = vmul.f32 %v88, %v1889
    %v1891 = vmul.f32 %v89, %v1888
    %v1892 = vadd.f32 %v1874, %v1890
    %v1893 = vadd.f32 %v1876, %v1891
    %1894 = vrot.lane.b32.xlu0 %v1880, 127
    %v1895 = vpop.permute.xlu0 %1894
    %1896 = vrot.lane.b32.xlu0 %v1882, 127
    %v1897 = vpop.permute.xlu0 %1896
    %v1898 = vsel %vm515, %v1895, %v1897
    %v1899 = vsel %vm515, %v1897, %v1895
    %v1900 = vmul.f32 %v94, %v1898
    %v1901 = vmul.f32 %v95, %v1899
    %v1902 = vadd.f32 %v1892, %v1900
    %v1903 = vadd.f32 %v1893, %v1901
    %v1904 = vld [vmem:[%s8] sm:$0x3]
    %1906 = vset.pattern.permute.xlu0 0
    %1907 = vperm.xlu0 %1906, %v1904
    %v1908 = vpop.permute.xlu0 %1907
    %v1910 = vadd.f32 %v1902, %v1908
    %v1911 = vadd.f32 %v1903, %v1908
    %v1914 = vcombine.low %v1910, %v1911
    %v1916 = vunpack.c.l.s4 1983009808
    %v1917 = vunpack.c.0.s8 %v1916
    %v1918 = vlaneseq
    %v1919 = vshrl.u32 %v1918, 7
    %v1920 = vsub.s32 %v1917, %v1919
    %v1921 = vrot.slane %v1914, %v1920
    %1923 = vst [vmem:[#allocation2] sm:$0xf] %v1921
    // Predicated region
    $region38: #{tpu_custom_call.1} parent=1 // pred_check
      _
    $region39: #{tpu_custom_call.1} parent=1 // pred_check_branch
      %1925 = sbr.rel (0) target = $region41
    $region40: #{tpu_custom_call.1} parent=1 // pred_region
      %s1927 = ssub.s32 64, 64
      %1928 = vsyncadd [#allocation3], %s1927
      %s1930 = sshll.u32 [#allocation2], 4
      %s1931 = int_to_ptr.vmem [resolvable:$true] %s1930
      %1933 = dma.vmem_to_hbm [thread:$0]  %s1931, 64, %s9, [#allocation3]
    $region41: #{tpu_custom_call.1} parent=1 // pred_fallthru
      _
    // Predicated region
    $region42: #{tpu_custom_call.1} parent=1 // pred_check
      _
    $region43: #{tpu_custom_call.1} parent=1 // pred_check_branch
      %1935 = sbr.rel (0) target = $region45
    $region44: #{tpu_custom_call.1} parent=1 // pred_region
      %1936 = dma.done [#allocation3], 64
    $region45: #{tpu_custom_call.1} parent=1 // pred_fallthru
      _
    %1937 = vsyncpa [#allocation3], 1

</llo_original>
